<compile_context>
chip_gen: v7x
topology: tpu7x:2x2x1
jax: 0.10.0
libtpu: 0.0.40
codegen_flags: <defaults>
</compile_context>

<pallas_src>
import math
import jax
import jax.numpy as jnp
from jax import lax
from jax.experimental import pallas as pl
from jax.experimental.pallas import tpu as pltpu


def _round_up(x, m):
    return (x + m - 1) // m * m


def cnn_kernel(x_ref, w1_ref, b1_ref, w2_ref, b2_ref,
               wl1_ref, bl1_ref, wl2_ref, bl2_ref,
               out_ref, h1p_ref):
    """One grid step = TILE_B sentence pairs, fully fused conv/pool/MLP stack."""
    two, tb, sp, e = x_ref.shape          # [2, TILE_B, Sp, E]
    ke, h = w1_ref.shape                  # [K*E, H]
    k = ke // e
    s = sp - (k - 1)                      # original sequence length
    pad = (k - 1) // 2
    t2 = two * tb                         # both sentences folded into the MXU M dimension
    m = t2 * s

    # Load the activation block once; all elementwise math stays in f32 (no bf16 VPU on v5e).
    x = x_ref[...].astype(jnp.float32).reshape(t2, sp, e)

    # ---- conv1 as ONE im2col matmul: [M, K*E] @ [K*E, H] (contraction depth K*E) ----
    xh = jnp.concatenate([x[:, j:j + s, :] for j in range(k)], axis=-1)
    xh = xh.reshape(m, k * e)
    h1 = jnp.dot(xh, w1_ref[...], preferred_element_type=jnp.float32)
    h1 = jnp.maximum(h1 + b1_ref[0], 0.0)                          # [M, H]

    # ---- "same" padding for conv2 via a VMEM scratch (no jnp.concatenate copies) ----
    if pad > 0:
        h1p_ref[:, 0:pad, :] = jnp.zeros((t2, pad, h), jnp.float32)
        h1p_ref[:, pad + s:sp, :] = jnp.zeros((t2, sp - pad - s, h), jnp.float32)
    h1p_ref[:, pad:pad + s, :] = h1.reshape(t2, s, h)

    # ---- conv2 as ONE im2col matmul read straight from the scratch ----
    xh2 = jnp.concatenate([h1p_ref[:, j:j + s, :] for j in range(k)], axis=-1)
    xh2 = xh2.reshape(m, k * h)
    h2 = jnp.dot(xh2, w2_ref[...], preferred_element_type=jnp.float32)
    h2 = jnp.maximum(h2 + b2_ref[0], 0.0)                          # [M, H]

    # ---- max_pool1d over the full (un-padded) sequence ----
    pooled = jnp.max(h2.reshape(two, tb, s, h), axis=2)            # [2, TILE_B, H]
    hid1 = pooled[0]
    hid2 = pooled[1]

    # ---- linear1: split-weight form (hid1 @ W[:H] + hid2 @ W[H:]) avoids lane concat ----
    z = (jnp.dot(hid1, wl1_ref[0:h, :], preferred_element_type=jnp.float32)
         + jnp.dot(hid2, wl1_ref[h:2 * h, :], preferred_element_type=jnp.float32)
         + bl1_ref[0])
    z = jnp.maximum(z, 0.0)                                        # [TILE_B, H]

    # ---- linear2 into a lane-dense (128-wide, zero-padded) output block ----
    out_ref[...] = (jnp.dot(z, wl2_ref[...], preferred_element_type=jnp.float32)
                    + bl2_ref[0])                                  # [TILE_B, Cp]


def cnn_forward(params, emb_table, x1, lengths1, x2, lengths2,
                *, tile_b=64, input_dtype=jnp.float32):
    """Batch-blocked Pallas forward.

    tile_b: batch elements per grid step (rounded to a multiple of 8).  With both
      sentences fused, the MXU M dimension per step is 2*tile_b*S (>=256 fills the
      v6e/v7x MXU; >=512 keeps all four v5e MXUs fed).
    input_dtype: set to jnp.bfloat16 to halve activation HBM->VMEM DMA traffic
      (matmuls still accumulate in f32); default f32 preserves exact semantics.
    NOTE: lengths1 / lengths2 are unused by the reference forward; kept for parity.
    """
    del lengths1, lengths2
    w1, b1, w2, b2, wl1, bl1, wl2, bl2 = params
    B, S = x1.shape
    K, E, H = w1.shape
    C = wl2.shape[1]
    pad = K // 2
    Sp = S + 2 * pad
    Cp = max(128, _round_up(C, 128))          # lane-dense classifier output

    tile_b = max(8, _round_up(min(tile_b, B), 8))
    Bp = _round_up(B, tile_b)

    # ---- glue (plain JAX): gather embeddings, stack the two sentences, pad seq & batch ----
    e1 = jnp.take(emb_table, x1, axis=0)                          # [B, S, E]
    e2 = jnp.take(emb_table, x2, axis=0)
    e = jnp.stack([e1, e2], axis=0)                               # [2, B, S, E]
    e = jnp.pad(e, ((0, 0), (0, Bp - B), (pad, pad), (0, 0)))     # [2, Bp, Sp, E]
    e = e.astype(input_dtype)

    # Pre-reshape conv weights for the im2col matmuls; pad classifier to 128 lanes.
    w1r = w1.reshape(K * E, H).astype(jnp.float32)
    w2r = w2.reshape(K * H, H).astype(jnp.float32)
    wl2p = jnp.pad(wl2, ((0, 0), (0, Cp - C))).astype(jnp.float32)
    bl2p = jnp.pad(bl2, ((0, 0), (0, Cp - C))).astype(jnp.float32)

    def full(shape):
        # weights/biases stay resident in VMEM across the whole grid
        return pl.BlockSpec(shape, lambda i: (0,) * len(shape))

    out = pl.pallas_call(
        cnn_kernel,
        out_shape=jax.ShapeDtypeStruct((Bp, Cp), jnp.float32),
        grid=(Bp // tile_b,),
        in_specs=[
            pl.BlockSpec((2, tile_b, Sp, E), lambda i: (0, i, 0, 0)),  # activations
            full((K * E, H)), full((1, H)),        # conv1 weight / bias
            full((K * H, H)), full((1, H)),        # conv2 weight / bias
            full((2 * H, H)), full((1, H)),        # linear1 weight / bias
            full((H, Cp)), full((1, Cp)),          # linear2 weight / bias (lane-padded)
        ],
        out_specs=pl.BlockSpec((tile_b, Cp), lambda i: (i, 0)),
        scratch_shapes=[pltpu.VMEM((2 * tile_b, Sp, H), jnp.float32)],  # padded hidden
        compiler_params=pltpu.CompilerParams(
            dimension_semantics=("parallel",)),
    )(e, w1r, b1.astype(jnp.float32), w2r, b2.astype(jnp.float32),
      wl1.astype(jnp.float32), bl1.astype(jnp.float32), wl2p, bl2p)

    return out[:B, :C]


def cnn_reference(params, emb_table, x1, x2, pad):
    """Pure-JAX reference using lax.conv_general_dilated (mirrors torch semantics)."""
    w1, b1, w2, b2, wl1, bl1, wl2, bl2 = params

    def conv1d_same(x, w_kio, b):   # x [B,S,Cin], w [K,Cin,Cout]
        y = lax.conv_general_dilated(
            x, w_kio, window_strides=(1,), padding=[(pad, pad)],
            dimension_numbers=('NWC', 'WIO', 'NWC'))
        return y + b[None]

    def encode(x_tok):
        e = jnp.take(emb_table, x_tok, axis=0).astype(jnp.float32)
        h = jax.nn.relu(conv1d_same(e, w1, b1[0]))
        h = jax.nn.relu(conv1d_same(h, w2, b2[0]))
        return jnp.max(h, axis=1)                      # [B, H]

    full = jnp.concatenate([encode(x1), encode(x2)], axis=1)
    z = jax.nn.relu(full @ wl1 + bl1[0])
    return z @ wl2 + bl2[0]


if __name__ == "__main__":
    # small shapes consistent with the module
    num_embeddings, embedding_dim = 50, 32
    hidden_size, kernel, num_classes = 32, 3, 3
    B, S = 2, 8
    pad = math.floor(kernel / 2)

    key = jax.random.PRNGKey(0)
    keys = jax.random.split(key, 12)

    emb_table = jax.random.normal(keys[0], (num_embeddings, embedding_dim),
                                  jnp.float32) * 0.1
    w1 = jax.random.normal(keys[1], (kernel, embedding_dim, hidden_size),
                           jnp.float32) * 0.1
    b1 = jax.random.normal(keys[2], (1, hidden_size), jnp.float32) * 0.1
    w2 = jax.random.normal(keys[3], (kernel, hidden_size, hidden_size),
                           jnp.float32) * 0.1
    b2 = jax.random.normal(keys[4], (1, hidden_size), jnp.float32) * 0.1
    wl1 = jax.random.normal(keys[5], (2 * hidden_size, hidden_size),
                            jnp.float32) * 0.1
    bl1 = jax.random.normal(keys[6], (1, hidden_size), jnp.float32) * 0.1
    wl2 = jax.random.normal(keys[7], (hidden_size, num_classes),
                            jnp.float32) * 0.1
    bl2 = jax.random.normal(keys[8], (1, num_classes), jnp.float32) * 0.1
    params = (w1, b1, w2, b2, wl1, bl1, wl2, bl2)

    fwd = jax.jit(cnn_forward, static_argnames=("tile_b", "input_dtype"))

    # --- case 1: tiny batch (module demo shapes) ---
    x1 = jax.random.randint(keys[9], (B, S), 0, num_embeddings, jnp.int32)
    x2 = jax.random.randint(keys[10], (B, S), 0, num_embeddings, jnp.int32)
    lengths1 = jnp.full((B,), S, jnp.int32)   # unused by forward (parity only)
    lengths2 = jnp.full((B,), S, jnp.int32)

    logits = jax.block_until_ready(fwd(params, emb_table, x1, lengths1, x2, lengths2))
    ref = cnn_reference(params, emb_table, x1, x2, pad)
    assert logits.shape == (B, num_classes)
    err1 = float(jnp.max(jnp.abs(logits - ref)))
    assert jnp.allclose(logits, ref, atol=2e-4, rtol=2e-4), err1

    # --- case 2: batch-tiled grid (multiple grid steps + batch-padding path) ---
    B2 = 20
    x1b = jax.random.randint(keys[11], (B2, S), 0, num_embeddings, jnp.int32)
    x2b = jax.random.randint(keys[9], (B2, S), 0, num_embeddings, jnp.int32)
    l1b = jnp.full((B2,), S, jnp.int32)
    l2b = jnp.full((B2,), S, jnp.int32)

    logits2 = jax.block_until_ready(
        fwd(params, emb_table, x1b, l1b, x2b, l2b, tile_b=8))
    ref2 = cnn_reference(params, emb_table, x1b, x2b, pad)
    assert logits2.shape == (B2, num_classes)
    err2 = float(jnp.max(jnp.abs(logits2 - ref2)))
    assert jnp.allclose(logits2, ref2, atol=2e-4, rtol=2e-4), err2

    print("KERNEL_OK")
</pallas_src>

<mosaic_0001>
module attributes {stable_mosaic.version = 11 : i64} {
  func.func @cnn_kernel(%arg0: i32, %arg1: memref<2x8x10x32xf32, #tpu.memory_space<vmem>>, %arg2: memref<96x32xf32, #tpu.memory_space<vmem>>, %arg3: memref<1x32xf32, #tpu.memory_space<vmem>>, %arg4: memref<96x32xf32, #tpu.memory_space<vmem>>, %arg5: memref<1x32xf32, #tpu.memory_space<vmem>>, %arg6: memref<64x32xf32, #tpu.memory_space<vmem>>, %arg7: memref<1x32xf32, #tpu.memory_space<vmem>>, %arg8: memref<32x128xf32, #tpu.memory_space<vmem>>, %arg9: memref<1x128xf32, #tpu.memory_space<vmem>>, %arg10: memref<8x128xf32, #tpu.memory_space<vmem>>, %arg11: memref<16x10x32xf32, #tpu.memory_space<vmem>>) attributes {dimension_semantics = [#tpu.dimension_semantics<parallel>], iteration_bounds = array<i64: 1>, scalar_prefetch = 0 : i64, scratch_operands = 1 : i64, tpu.core_type = #tpu.core_type<tc>, window_params = [{transform_indices = @transform_0, window_bounds = array<i64: 2, 8, 10, 32>}, {pipeline_mode = #tpu.pipeline_mode<synchronous>, transform_indices = @transform_1, window_bounds = array<i64: 96, 32>}, {pipeline_mode = #tpu.pipeline_mode<synchronous>, transform_indices = @transform_2, window_bounds = array<i64: 1, 32>}, {pipeline_mode = #tpu.pipeline_mode<synchronous>, transform_indices = @transform_3, window_bounds = array<i64: 96, 32>}, {pipeline_mode = #tpu.pipeline_mode<synchronous>, transform_indices = @transform_4, window_bounds = array<i64: 1, 32>}, {pipeline_mode = #tpu.pipeline_mode<synchronous>, transform_indices = @transform_5, window_bounds = array<i64: 64, 32>}, {pipeline_mode = #tpu.pipeline_mode<synchronous>, transform_indices = @transform_6, window_bounds = array<i64: 1, 32>}, {pipeline_mode = #tpu.pipeline_mode<synchronous>, transform_indices = @transform_7, window_bounds = array<i64: 32, 128>}, {pipeline_mode = #tpu.pipeline_mode<synchronous>, transform_indices = @transform_8, window_bounds = array<i64: 1, 128>}, {transform_indices = @transform_9, window_bounds = array<i64: 8, 128>}]} {
    %c0 = arith.constant 0 : index
    %c0_0 = arith.constant 0 : index
    %c0_1 = arith.constant 0 : index
    %c0_2 = arith.constant 0 : index
    %0 = vector.load %arg1[%c0, %c0_0, %c0_1, %c0_2] : memref<2x8x10x32xf32, #tpu.memory_space<vmem>>, vector<2x8x10x32xf32>
    %1 = vector.shape_cast %0 : vector<2x8x10x32xf32> to vector<16x10x32xf32>
    %2 = vector.extract_strided_slice %1 {offsets = [0, 0, 0], sizes = [16, 8, 32], strides = [1, 1, 1]} : vector<16x10x32xf32> to vector<16x8x32xf32>
    %3 = vector.extract_strided_slice %1 {offsets = [0, 1, 0], sizes = [16, 8, 32], strides = [1, 1, 1]} : vector<16x10x32xf32> to vector<16x8x32xf32>
    %4 = vector.extract_strided_slice %1 {offsets = [0, 2, 0], sizes = [16, 8, 32], strides = [1, 1, 1]} : vector<16x10x32xf32> to vector<16x8x32xf32>
    %5 = tpu.concatenate %2, %3, %4 in 2 : vector<16x8x32xf32>, vector<16x8x32xf32>, vector<16x8x32xf32> -> vector<16x8x96xf32>
    %6 = vector.shape_cast %5 : vector<16x8x96xf32> to vector<128x96xf32>
    %c0_3 = arith.constant 0 : index
    %c0_4 = arith.constant 0 : index
    %7 = vector.load %arg2[%c0_3, %c0_4] : memref<96x32xf32, #tpu.memory_space<vmem>>, vector<96x32xf32>
    %cst = arith.constant dense<0.000000e+00> : vector<128x32xf32>
    %8 = tpu.matmul %6, %7, %cst {dimension_numbers = #tpu.dot_dimension_numbers<[1], [0], [0], [1], [0, 0, 1, 1], [], []>} : vector<128x96xf32>, vector<96x32xf32>, vector<128x32xf32> -> vector<128x32xf32>
    %c0_5 = arith.constant 0 : index
    %c0_6 = arith.constant 0 : index
    %9 = vector.load %arg3[%c0_5, %c0_6] : memref<1x32xf32, #tpu.memory_space<vmem>>, vector<1x32xf32>
    %10 = vector.shape_cast %9 : vector<1x32xf32> to vector<32xf32>
    %11 = vector.shape_cast %10 : vector<32xf32> to vector<1x32xf32>
    %12 = vector.broadcast %11 : vector<1x32xf32> to vector<128x32xf32>
    %13 = arith.addf %8, %12 : vector<128x32xf32>
    %cst_7 = arith.constant 0.000000e+00 : f32
    %14 = vector.broadcast %cst_7 : f32 to vector<128x32xf32>
    %15 = arith.maximumf %13, %14 : vector<128x32xf32>
    %cst_8 = arith.constant 0.000000e+00 : f32
    %16 = vector.broadcast %cst_8 : f32 to vector<16x1x32xf32>
    %c0_9 = arith.constant 0 : index
    %c0_10 = arith.constant 0 : index
    %c0_11 = arith.constant 0 : index
    %17 = vector.load %arg11[%c0_9, %c0_10, %c0_11] : memref<16x10x32xf32, #tpu.memory_space<vmem>>, vector<16x1x32xf32>
    tpu.vector_store %arg11[%c0_9, %c0_10, %c0_11], %16 {strides = array<i32>} : memref<16x10x32xf32, #tpu.memory_space<vmem>>, vector<16x1x32xf32>,
    %cst_12 = arith.constant 0.000000e+00 : f32
    %18 = vector.broadcast %cst_12 : f32 to vector<16x1x32xf32>
    %c0_13 = arith.constant 0 : index
    %c9 = arith.constant 9 : index
    %c0_14 = arith.constant 0 : index
    %19 = vector.load %arg11[%c0_13, %c9, %c0_14] : memref<16x10x32xf32, #tpu.memory_space<vmem>>, vector<16x1x32xf32>
    tpu.vector_store %arg11[%c0_13, %c9, %c0_14], %18 {strides = array<i32>} : memref<16x10x32xf32, #tpu.memory_space<vmem>>, vector<16x1x32xf32>,
    %20 = vector.shape_cast %15 : vector<128x32xf32> to vector<16x8x32xf32>
    %c0_15 = arith.constant 0 : index
    %c1 = arith.constant 1 : index
    %c0_16 = arith.constant 0 : index
    %21 = vector.load %arg11[%c0_15, %c1, %c0_16] : memref<16x10x32xf32, #tpu.memory_space<vmem>>, vector<16x8x32xf32>
    tpu.vector_store %arg11[%c0_15, %c1, %c0_16], %20 {strides = array<i32>} : memref<16x10x32xf32, #tpu.memory_space<vmem>>, vector<16x8x32xf32>,
    %c0_17 = arith.constant 0 : index
    %c0_18 = arith.constant 0 : index
    %c0_19 = arith.constant 0 : index
    %22 = vector.load %arg11[%c0_17, %c0_18, %c0_19] : memref<16x10x32xf32, #tpu.memory_space<vmem>>, vector<16x8x32xf32>
    %c0_20 = arith.constant 0 : index
    %c1_21 = arith.constant 1 : index
    %c0_22 = arith.constant 0 : index
    %23 = vector.load %arg11[%c0_20, %c1_21, %c0_22] : memref<16x10x32xf32, #tpu.memory_space<vmem>>, vector<16x8x32xf32>
    %c0_23 = arith.constant 0 : index
    %c2 = arith.constant 2 : index
    %c0_24 = arith.constant 0 : index
    %24 = vector.load %arg11[%c0_23, %c2, %c0_24] : memref<16x10x32xf32, #tpu.memory_space<vmem>>, vector<16x8x32xf32>
    %25 = tpu.concatenate %22, %23, %24 in 2 : vector<16x8x32xf32>, vector<16x8x32xf32>, vector<16x8x32xf32> -> vector<16x8x96xf32>
    %26 = vector.shape_cast %25 : vector<16x8x96xf32> to vector<128x96xf32>
    %c0_25 = arith.constant 0 : index
    %c0_26 = arith.constant 0 : index
    %27 = vector.load %arg4[%c0_25, %c0_26] : memref<96x32xf32, #tpu.memory_space<vmem>>, vector<96x32xf32>
    %cst_27 = arith.constant dense<0.000000e+00> : vector<128x32xf32>
    %28 = tpu.matmul %26, %27, %cst_27 {dimension_numbers = #tpu.dot_dimension_numbers<[1], [0], [0], [1], [0, 0, 1, 1], [], []>} : vector<128x96xf32>, vector<96x32xf32>, vector<128x32xf32> -> vector<128x32xf32>
    %c0_28 = arith.constant 0 : index
    %c0_29 = arith.constant 0 : index
    %29 = vector.load %arg5[%c0_28, %c0_29] : memref<1x32xf32, #tpu.memory_space<vmem>>, vector<1x32xf32>
    %30 = vector.shape_cast %29 : vector<1x32xf32> to vector<32xf32>
    %31 = vector.shape_cast %30 : vector<32xf32> to vector<1x32xf32>
    %32 = vector.broadcast %31 : vector<1x32xf32> to vector<128x32xf32>
    %33 = arith.addf %28, %32 : vector<128x32xf32>
    %cst_30 = arith.constant 0.000000e+00 : f32
    %34 = vector.broadcast %cst_30 : f32 to vector<128x32xf32>
    %35 = arith.maximumf %33, %34 : vector<128x32xf32>
    %36 = vector.shape_cast %35 : vector<128x32xf32> to vector<2x8x8x32xf32>
    %cst_31 = arith.constant dense<0xFF800000> : vector<2x8x32xf32>
    %37 = vector.multi_reduction <maximumf>, %36, %cst_31 [2] : vector<2x8x8x32xf32> to vector<2x8x32xf32>
    %38 = vector.extract_strided_slice %37 {offsets = [0, 0, 0], sizes = [1, 8, 32], strides = [1, 1, 1]} : vector<2x8x32xf32> to vector<1x8x32xf32>
    %39 = vector.shape_cast %38 : vector<1x8x32xf32> to vector<8x32xf32>
    %40 = vector.extract_strided_slice %37 {offsets = [1, 0, 0], sizes = [1, 8, 32], strides = [1, 1, 1]} : vector<2x8x32xf32> to vector<1x8x32xf32>
    %41 = vector.shape_cast %40 : vector<1x8x32xf32> to vector<8x32xf32>
    %c0_32 = arith.constant 0 : index
    %c0_33 = arith.constant 0 : index
    %42 = vector.load %arg6[%c0_32, %c0_33] : memref<64x32xf32, #tpu.memory_space<vmem>>, vector<32x32xf32>
    %cst_34 = arith.constant dense<0.000000e+00> : vector<8x32xf32>
    %43 = tpu.matmul %39, %42, %cst_34 {dimension_numbers = #tpu.dot_dimension_numbers<[1], [0], [0], [1], [0, 0, 1, 1], [], []>} : vector<8x32xf32>, vector<32x32xf32>, vector<8x32xf32> -> vector<8x32xf32>
    %c32 = arith.constant 32 : index
    %c0_35 = arith.constant 0 : index
    %44 = vector.load %arg6[%c32, %c0_35] : memref<64x32xf32, #tpu.memory_space<vmem>>, vector<32x32xf32>
    %cst_36 = arith.constant dense<0.000000e+00> : vector<8x32xf32>
    %45 = tpu.matmul %41, %44, %cst_36 {dimension_numbers = #tpu.dot_dimension_numbers<[1], [0], [0], [1], [0, 0, 1, 1], [], []>} : vector<8x32xf32>, vector<32x32xf32>, vector<8x32xf32> -> vector<8x32xf32>
    %46 = arith.addf %43, %45 : vector<8x32xf32>
    %c0_37 = arith.constant 0 : index
    %c0_38 = arith.constant 0 : index
    %47 = vector.load %arg7[%c0_37, %c0_38] : memref<1x32xf32, #tpu.memory_space<vmem>>, vector<1x32xf32>
    %48 = vector.shape_cast %47 : vector<1x32xf32> to vector<32xf32>
    %49 = vector.shape_cast %48 : vector<32xf32> to vector<1x32xf32>
    %50 = vector.broadcast %49 : vector<1x32xf32> to vector<8x32xf32>
    %51 = arith.addf %46, %50 : vector<8x32xf32>
    %cst_39 = arith.constant 0.000000e+00 : f32
    %52 = vector.broadcast %cst_39 : f32 to vector<8x32xf32>
    %53 = arith.maximumf %51, %52 : vector<8x32xf32>
    %c0_40 = arith.constant 0 : index
    %c0_41 = arith.constant 0 : index
    %54 = vector.load %arg8[%c0_40, %c0_41] : memref<32x128xf32, #tpu.memory_space<vmem>>, vector<32x128xf32>
    %cst_42 = arith.constant dense<0.000000e+00> : vector<8x128xf32>
    %55 = tpu.matmul %53, %54, %cst_42 {dimension_numbers = #tpu.dot_dimension_numbers<[1], [0], [0], [1], [0, 0, 1, 1], [], []>} : vector<8x32xf32>, vector<32x128xf32>, vector<8x128xf32> -> vector<8x128xf32>
    %c0_43 = arith.constant 0 : index
    %c0_44 = arith.constant 0 : index
    %56 = vector.load %arg9[%c0_43, %c0_44] : memref<1x128xf32, #tpu.memory_space<vmem>>, vector<1x128xf32>
    %57 = vector.shape_cast %56 : vector<1x128xf32> to vector<128xf32>
    %58 = vector.shape_cast %57 : vector<128xf32> to vector<1x128xf32>
    %59 = vector.broadcast %58 : vector<1x128xf32> to vector<8x128xf32>
    %60 = arith.addf %55, %59 : vector<8x128xf32>
    %c0_45 = arith.constant 0 : index
    %c0_46 = arith.constant 0 : index
    %61 = vector.load %arg10[%c0_45, %c0_46] : memref<8x128xf32, #tpu.memory_space<vmem>>, vector<8x128xf32>
    tpu.vector_store %arg10[%c0_45, %c0_46], %60 {strides = array<i32>} : memref<8x128xf32, #tpu.memory_space<vmem>>, vector<8x128xf32>,
    return
  }
  func.func @transform_0(%arg0: i32) -> (i32, i32, i32, i32) {
    %c0_i32 = arith.constant 0 : i32
    %c0_i32_0 = arith.constant 0 : i32
    %c0_i32_1 = arith.constant 0 : i32
    %c0_i32_2 = arith.constant 0 : i32
    return %c0_i32, %arg0, %c0_i32_0, %c0_i32_1 : i32, i32, i32, i32
  }
  func.func @transform_1(%arg0: i32) -> (i32, i32) {
    %c0_i32 = arith.constant 0 : i32
    %c0_i32_0 = arith.constant 0 : i32
    %c0_i32_1 = arith.constant 0 : i32
    return %c0_i32, %c0_i32_0 : i32, i32
  }
  func.func @transform_2(%arg0: i32) -> (i32, i32) {
    %c0_i32 = arith.constant 0 : i32
    %c0_i32_0 = arith.constant 0 : i32
    %c0_i32_1 = arith.constant 0 : i32
    return %c0_i32, %c0_i32_0 : i32, i32
  }
  func.func @transform_3(%arg0: i32) -> (i32, i32) {
    %c0_i32 = arith.constant 0 : i32
    %c0_i32_0 = arith.constant 0 : i32
    %c0_i32_1 = arith.constant 0 : i32
    return %c0_i32, %c0_i32_0 : i32, i32
  }
  func.func @transform_4(%arg0: i32) -> (i32, i32) {
    %c0_i32 = arith.constant 0 : i32
    %c0_i32_0 = arith.constant 0 : i32
    %c0_i32_1 = arith.constant 0 : i32
    return %c0_i32, %c0_i32_0 : i32, i32
  }
  func.func @transform_5(%arg0: i32) -> (i32, i32) {
    %c0_i32 = arith.constant 0 : i32
    %c0_i32_0 = arith.constant 0 : i32
    %c0_i32_1 = arith.constant 0 : i32
    return %c0_i32, %c0_i32_0 : i32, i32
  }
  func.func @transform_6(%arg0: i32) -> (i32, i32) {
    %c0_i32 = arith.constant 0 : i32
    %c0_i32_0 = arith.constant 0 : i32
    %c0_i32_1 = arith.constant 0 : i32
    return %c0_i32, %c0_i32_0 : i32, i32
  }
  func.func @transform_7(%arg0: i32) -> (i32, i32) {
    %c0_i32 = arith.constant 0 : i32
    %c0_i32_0 = arith.constant 0 : i32
    %c0_i32_1 = arith.constant 0 : i32
    return %c0_i32, %c0_i32_0 : i32, i32
  }
  func.func @transform_8(%arg0: i32) -> (i32, i32) {
    %c0_i32 = arith.constant 0 : i32
    %c0_i32_0 = arith.constant 0 : i32
    %c0_i32_1 = arith.constant 0 : i32
    return %c0_i32, %c0_i32_0 : i32, i32
  }
  func.func @transform_9(%arg0: i32) -> (i32, i32) {
    %c0_i32 = arith.constant 0 : i32
    %c0_i32_0 = arith.constant 0 : i32
    return %arg0, %c0_i32 : i32, i32
  }
}

</mosaic_0001>

<llo_original>
// kernel: cnn_forward.1
$region0: #{cnn_forward.1}
  #allocation0 [shape = 'u32[]', space=smem, size = 0x4, offset = 0x4, fixed_abs, tag = 'smem constant byte address 0x4 - core index']
  #allocation1 [shape = 'u32[144,128]{1,0:T(1,128)}', space=vmem, size = 0x12000, scoped, tag = 'internal scratch']
  #allocation2 [shape = 'f32[16,10,32]{2,1,0:T(8,128)}', space=vmem, size = 0x20000, scoped, tag = 'scratch operand']
  %s0 = inlined_call_operand.vmem [shape: f32[2,8,10,32], index: 0, kind: input, shape index: {}]
  %s1 = inlined_call_operand.vmem [shape: f32[96,32], index: 1, kind: input, shape index: {}]
  %s2 = inlined_call_operand.vmem [shape: f32[1,32], index: 2, kind: input, shape index: {}]
  %s3 = inlined_call_operand.vmem [shape: f32[96,32], index: 3, kind: input, shape index: {}]
  %s4 = inlined_call_operand.vmem [shape: f32[1,32], index: 4, kind: input, shape index: {}]
  %s5 = inlined_call_operand.vmem [shape: f32[64,32], index: 5, kind: input, shape index: {}]
  %s6 = inlined_call_operand.vmem [shape: f32[1,32], index: 6, kind: input, shape index: {}]
  %s7 = inlined_call_operand.vmem [shape: f32[32,128], index: 7, kind: input, shape index: {}]
  %s8 = inlined_call_operand.vmem [shape: f32[1,128], index: 8, kind: input, shape index: {}]
  %s9 = inlined_call_operand.vmem [shape: f32[8,128], index: 9, kind: output, shape index: {}]
  %s10 = sld [smem:[#allocation0]]
  $region46: #{cnn_forward.1} parent=0
    _
  %s12 = ssub.s32 1, %s10
  %s13 = scalar_select 0, %s12, %s10
  // Predicated region
  $region2: #{cnn_forward.1} parent=0 // pred_check
    _
  $region3: #{cnn_forward.1} parent=0 // pred_check_branch
    %15 = sbr.rel (0) target = $region5
  $region4: #{cnn_forward.1} parent=0 // pred_region
    _
  $region5: #{cnn_forward.1} parent=0 // pred_fallthru
    _
  // Predicated region
  $region6: #{cnn_forward.1} parent=0 // pred_check
    _
  $region7: #{cnn_forward.1} parent=0 // pred_check_branch
    %17 = sbr.rel (0) target = $region9
  $region8: #{cnn_forward.1} parent=0 // pred_region
    _
  $region9: #{cnn_forward.1} parent=0 // pred_fallthru
    _
  // Predicated region
  $region10: #{cnn_forward.1} parent=0 // pred_check
    _
  $region11: #{cnn_forward.1} parent=0 // pred_check_branch
    %19 = sbr.rel (0) target = $region13
  $region12: #{cnn_forward.1} parent=0 // pred_region
    _
  $region13: #{cnn_forward.1} parent=0 // pred_fallthru
    _
  // Predicated region
  $region14: #{cnn_forward.1} parent=0 // pred_check
    _
  $region15: #{cnn_forward.1} parent=0 // pred_check_branch
    %21 = sbr.rel (0) target = $region17
  $region16: #{cnn_forward.1} parent=0 // pred_region
    _
  $region17: #{cnn_forward.1} parent=0 // pred_fallthru
    _
  // Predicated region
  $region18: #{cnn_forward.1} parent=0 // pred_check
    _
  $region19: #{cnn_forward.1} parent=0 // pred_check_branch
    %23 = sbr.rel (0) target = $region21
  $region20: #{cnn_forward.1} parent=0 // pred_region
    _
  $region21: #{cnn_forward.1} parent=0 // pred_fallthru
    _
  // Predicated region
  $region22: #{cnn_forward.1} parent=0 // pred_check
    _
  $region23: #{cnn_forward.1} parent=0 // pred_check_branch
    %25 = sbr.rel (0) target = $region25
  $region24: #{cnn_forward.1} parent=0 // pred_region
    _
  $region25: #{cnn_forward.1} parent=0 // pred_fallthru
    _
  // Predicated region
  $region26: #{cnn_forward.1} parent=0 // pred_check
    _
  $region27: #{cnn_forward.1} parent=0 // pred_check_branch
    %27 = sbr.rel (0) target = $region29
  $region28: #{cnn_forward.1} parent=0 // pred_region
    _
  $region29: #{cnn_forward.1} parent=0 // pred_fallthru
    _
  // Predicated region
  $region30: #{cnn_forward.1} parent=0 // pred_check
    _
  $region31: #{cnn_forward.1} parent=0 // pred_check_branch
    %29 = sbr.rel (0) target = $region33
  $region32: #{cnn_forward.1} parent=0 // pred_region
    _
  $region33: #{cnn_forward.1} parent=0 // pred_fallthru
    _
  // Predicated region
  $region34: #{cnn_forward.1} parent=0 // pred_check
    _
  $region35: #{cnn_forward.1} parent=0 // pred_check_branch
    %31 = sbr.rel (0) target = $region37
  $region36: #{cnn_forward.1} parent=0 // pred_region
    _
  $region37: #{cnn_forward.1} parent=0 // pred_fallthru
    _
  %v32 = vld [vmem:[%s0] sm:$0xff]
  %v33 = vld [vmem:[%s0 + $0x8] sm:$0x3]
  %v34 = vld [vmem:[%s0 + $0x10] sm:$0xff]
  %v35 = vld [vmem:[%s0 + $0x18] sm:$0x3]
  %v36 = vld [vmem:[%s0 + $0x20] sm:$0xff]
  %v37 = vld [vmem:[%s0 + $0x28] sm:$0x3]
  %v38 = vld [vmem:[%s0 + $0x30] sm:$0xff]
  %v39 = vld [vmem:[%s0 + $0x38] sm:$0x3]
  %v40 = vld [vmem:[%s0 + $0x40] sm:$0xff]
  %v41 = vld [vmem:[%s0 + $0x48] sm:$0x3]
  %v42 = vld [vmem:[%s0 + $0x50] sm:$0xff]
  %v43 = vld [vmem:[%s0 + $0x58] sm:$0x3]
  %v44 = vld [vmem:[%s0 + $0x60] sm:$0xff]
  %v45 = vld [vmem:[%s0 + $0x68] sm:$0x3]
  %v46 = vld [vmem:[%s0 + $0x70] sm:$0xff]
  %v47 = vld [vmem:[%s0 + $0x78] sm:$0x3]
  %v48 = vld [vmem:[%s0 + $0x80] sm:$0xff]
  %v49 = vld [vmem:[%s0 + $0x88] sm:$0x3]
  %v50 = vld [vmem:[%s0 + $0x90] sm:$0xff]
  %v51 = vld [vmem:[%s0 + $0x98] sm:$0x3]
  %v52 = vld [vmem:[%s0 + $0xa0] sm:$0xff]
  %v53 = vld [vmem:[%s0 + $0xa8] sm:$0x3]
  %v54 = vld [vmem:[%s0 + $0xb0] sm:$0xff]
  %v55 = vld [vmem:[%s0 + $0xb8] sm:$0x3]
  %v56 = vld [vmem:[%s0 + $0xc0] sm:$0xff]
  %v57 = vld [vmem:[%s0 + $0xc8] sm:$0x3]
  %v58 = vld [vmem:[%s0 + $0xd0] sm:$0xff]
  %v59 = vld [vmem:[%s0 + $0xd8] sm:$0x3]
  %v60 = vld [vmem:[%s0 + $0xe0] sm:$0xff]
  %v61 = vld [vmem:[%s0 + $0xe8] sm:$0x3]
  %v62 = vld [vmem:[%s0 + $0xf0] sm:$0xff]
  %v63 = vld [vmem:[%s0 + $0xf8] sm:$0x3]
  %vm96 = vcmask 1046528
  %v97 = vrot.slane %v32, 1
  %v98 = vrot.slane %v33, 1
  %v99 = vsel %vm96, %v97, %v98
  %v100 = vrot.slane %v34, 1
  %v101 = vrot.slane %v35, 1
  %v102 = vsel %vm96, %v100, %v101
  %v103 = vrot.slane %v36, 1
  %v104 = vrot.slane %v37, 1
  %v105 = vsel %vm96, %v103, %v104
  %v106 = vrot.slane %v38, 1
  %v107 = vrot.slane %v39, 1
  %v108 = vsel %vm96, %v106, %v107
  %v109 = vrot.slane %v40, 1
  %v110 = vrot.slane %v41, 1
  %v111 = vsel %vm96, %v109, %v110
  %v112 = vrot.slane %v42, 1
  %v113 = vrot.slane %v43, 1
  %v114 = vsel %vm96, %v112, %v113
  %v115 = vrot.slane %v44, 1
  %v116 = vrot.slane %v45, 1
  %v117 = vsel %vm96, %v115, %v116
  %v118 = vrot.slane %v46, 1
  %v119 = vrot.slane %v47, 1
  %v120 = vsel %vm96, %v118, %v119
  %v121 = vrot.slane %v48, 1
  %v122 = vrot.slane %v49, 1
  %v123 = vsel %vm96, %v121, %v122
  %v124 = vrot.slane %v50, 1
  %v125 = vrot.slane %v51, 1
  %v126 = vsel %vm96, %v124, %v125
  %v127 = vrot.slane %v52, 1
  %v128 = vrot.slane %v53, 1
  %v129 = vsel %vm96, %v127, %v128
  %v130 = vrot.slane %v54, 1
  %v131 = vrot.slane %v55, 1
  %v132 = vsel %vm96, %v130, %v131
  %v133 = vrot.slane %v56, 1
  %v134 = vrot.slane %v57, 1
  %v135 = vsel %vm96, %v133, %v134
  %v136 = vrot.slane %v58, 1
  %v137 = vrot.slane %v59, 1
  %v138 = vsel %vm96, %v136, %v137
  %v139 = vrot.slane %v60, 1
  %v140 = vrot.slane %v61, 1
  %v141 = vsel %vm96, %v139, %v140
  %v142 = vrot.slane %v62, 1
  %v143 = vrot.slane %v63, 1
  %v144 = vsel %vm96, %v142, %v143
  %145 = vrot.lane.b32.xlu0 %v99, 32
  %v146 = vpop.permute.xlu0 %145
  %147 = vrot.lane.b32.xlu0 %v102, 32
  %v148 = vpop.permute.xlu0 %147
  %149 = vrot.lane.b32.xlu0 %v105, 32
  %v150 = vpop.permute.xlu0 %149
  %151 = vrot.lane.b32.xlu0 %v108, 32
  %v152 = vpop.permute.xlu0 %151
  %153 = vrot.lane.b32.xlu0 %v111, 32
  %v154 = vpop.permute.xlu0 %153
  %155 = vrot.lane.b32.xlu0 %v114, 32
  %v156 = vpop.permute.xlu0 %155
  %157 = vrot.lane.b32.xlu0 %v117, 32
  %v158 = vpop.permute.xlu0 %157
  %159 = vrot.lane.b32.xlu0 %v120, 32
  %v160 = vpop.permute.xlu0 %159
  %161 = vrot.lane.b32.xlu0 %v123, 32
  %v162 = vpop.permute.xlu0 %161
  %163 = vrot.lane.b32.xlu0 %v126, 32
  %v164 = vpop.permute.xlu0 %163
  %165 = vrot.lane.b32.xlu0 %v129, 32
  %v166 = vpop.permute.xlu0 %165
  %167 = vrot.lane.b32.xlu0 %v132, 32
  %v168 = vpop.permute.xlu0 %167
  %169 = vrot.lane.b32.xlu0 %v135, 32
  %v170 = vpop.permute.xlu0 %169
  %171 = vrot.lane.b32.xlu0 %v138, 32
  %v172 = vpop.permute.xlu0 %171
  %173 = vrot.lane.b32.xlu0 %v141, 32
  %v174 = vpop.permute.xlu0 %173
  %175 = vrot.lane.b32.xlu0 %v144, 32
  %v176 = vpop.permute.xlu0 %175
  %vm193 = vcmask 1045504
  %v194 = vrot.slane %v32, 2
  %v195 = vrot.slane %v33, 2
  %v196 = vsel %vm193, %v194, %v195
  %v197 = vrot.slane %v34, 2
  %v198 = vrot.slane %v35, 2
  %v199 = vsel %vm193, %v197, %v198
  %v200 = vrot.slane %v36, 2
  %v201 = vrot.slane %v37, 2
  %v202 = vsel %vm193, %v200, %v201
  %v203 = vrot.slane %v38, 2
  %v204 = vrot.slane %v39, 2
  %v205 = vsel %vm193, %v203, %v204
  %v206 = vrot.slane %v40, 2
  %v207 = vrot.slane %v41, 2
  %v208 = vsel %vm193, %v206, %v207
  %v209 = vrot.slane %v42, 2
  %v210 = vrot.slane %v43, 2
  %v211 = vsel %vm193, %v209, %v210
  %v212 = vrot.slane %v44, 2
  %v213 = vrot.slane %v45, 2
  %v214 = vsel %vm193, %v212, %v213
  %v215 = vrot.slane %v46, 2
  %v216 = vrot.slane %v47, 2
  %v217 = vsel %vm193, %v215, %v216
  %v218 = vrot.slane %v48, 2
  %v219 = vrot.slane %v49, 2
  %v220 = vsel %vm193, %v218, %v219
  %v221 = vrot.slane %v50, 2
  %v222 = vrot.slane %v51, 2
  %v223 = vsel %vm193, %v221, %v222
  %v224 = vrot.slane %v52, 2
  %v225 = vrot.slane %v53, 2
  %v226 = vsel %vm193, %v224, %v225
  %v227 = vrot.slane %v54, 2
  %v228 = vrot.slane %v55, 2
  %v229 = vsel %vm193, %v227, %v228
  %v230 = vrot.slane %v56, 2
  %v231 = vrot.slane %v57, 2
  %v232 = vsel %vm193, %v230, %v231
  %v233 = vrot.slane %v58, 2
  %v234 = vrot.slane %v59, 2
  %v235 = vsel %vm193, %v233, %v234
  %v236 = vrot.slane %v60, 2
  %v237 = vrot.slane %v61, 2
  %v238 = vsel %vm193, %v236, %v237
  %v239 = vrot.slane %v62, 2
  %v240 = vrot.slane %v63, 2
  %v241 = vsel %vm193, %v239, %v240
  %242 = vrot.lane.b32.xlu0 %v196, 64
  %v243 = vpop.permute.xlu0 %242
  %244 = vrot.lane.b32.xlu0 %v199, 64
  %v245 = vpop.permute.xlu0 %244
  %246 = vrot.lane.b32.xlu0 %v202, 64
  %v247 = vpop.permute.xlu0 %246
  %248 = vrot.lane.b32.xlu0 %v205, 64
  %v249 = vpop.permute.xlu0 %248
  %250 = vrot.lane.b32.xlu0 %v208, 64
  %v251 = vpop.permute.xlu0 %250
  %252 = vrot.lane.b32.xlu0 %v211, 64
  %v253 = vpop.permute.xlu0 %252
  %254 = vrot.lane.b32.xlu0 %v214, 64
  %v255 = vpop.permute.xlu0 %254
  %256 = vrot.lane.b32.xlu0 %v217, 64
  %v257 = vpop.permute.xlu0 %256
  %258 = vrot.lane.b32.xlu0 %v220, 64
  %v259 = vpop.permute.xlu0 %258
  %260 = vrot.lane.b32.xlu0 %v223, 64
  %v261 = vpop.permute.xlu0 %260
  %262 = vrot.lane.b32.xlu0 %v226, 64
  %v263 = vpop.permute.xlu0 %262
  %264 = vrot.lane.b32.xlu0 %v229, 64
  %v265 = vpop.permute.xlu0 %264
  %266 = vrot.lane.b32.xlu0 %v232, 64
  %v267 = vpop.permute.xlu0 %266
  %268 = vrot.lane.b32.xlu0 %v235, 64
  %v269 = vpop.permute.xlu0 %268
  %270 = vrot.lane.b32.xlu0 %v238, 64
  %v271 = vpop.permute.xlu0 %270
  %272 = vrot.lane.b32.xlu0 %v241, 64
  %v273 = vpop.permute.xlu0 %272
  %vm290 = vcmask 261120
  %v291 = vsel %vm290, %v32, %v146
  %v292 = vsel %vm290, %v34, %v148
  %v293 = vsel %vm290, %v36, %v150
  %v294 = vsel %vm290, %v38, %v152
  %v295 = vsel %vm290, %v40, %v154
  %v296 = vsel %vm290, %v42, %v156
  %v297 = vsel %vm290, %v44, %v158
  %v298 = vsel %vm290, %v46, %v160
  %v299 = vsel %vm290, %v48, %v162
  %v300 = vsel %vm290, %v50, %v164
  %v301 = vsel %vm290, %v52, %v166
  %v302 = vsel %vm290, %v54, %v168
  %v303 = vsel %vm290, %v56, %v170
  %v304 = vsel %vm290, %v58, %v172
  %v305 = vsel %vm290, %v60, %v174
  %v306 = vsel %vm290, %v62, %v176
  %vm307 = vcmask 523264
  %v308 = vsel %vm307, %v291, %v243
  %v309 = vsel %vm307, %v292, %v245
  %v310 = vsel %vm307, %v293, %v247
  %v311 = vsel %vm307, %v294, %v249
  %v312 = vsel %vm307, %v295, %v251
  %v313 = vsel %vm307, %v296, %v253
  %v314 = vsel %vm307, %v297, %v255
  %v315 = vsel %vm307, %v298, %v257
  %v316 = vsel %vm307, %v299, %v259
  %v317 = vsel %vm307, %v300, %v261
  %v318 = vsel %vm307, %v301, %v263
  %v319 = vsel %vm307, %v302, %v265
  %v320 = vsel %vm307, %v303, %v267
  %v321 = vsel %vm307, %v304, %v269
  %v322 = vsel %vm307, %v305, %v271
  %v323 = vsel %vm307, %v306, %v273
  %v324 = vld [vmem:[%s1] sm:$0xff]
  %v325 = vld [vmem:[%s1 + $0x8] sm:$0xff]
  %v326 = vld [vmem:[%s1 + $0x10] sm:$0xff]
  %v327 = vld [vmem:[%s1 + $0x18] sm:$0xff]
  %v328 = vld [vmem:[%s1 + $0x20] sm:$0xff]
  %v329 = vld [vmem:[%s1 + $0x28] sm:$0xff]
  %v330 = vld [vmem:[%s1 + $0x30] sm:$0xff]
  %v331 = vld [vmem:[%s1 + $0x38] sm:$0xff]
  %v332 = vld [vmem:[%s1 + $0x40] sm:$0xff]
  %v333 = vld [vmem:[%s1 + $0x48] sm:$0xff]
  %v334 = vld [vmem:[%s1 + $0x50] sm:$0xff]
  %v335 = vld [vmem:[%s1 + $0x58] sm:$0xff]
  %v336 = vld [vmem:[%s2] sm:$0x1]
  %v338 = vlaneseq
  %v339 = vshrl.u32 %v338, 7
  %v340 = vsub.s32 0, %v339
  %v341 = vrot.slane %v336, %v340
  %vm343 = vcmask 785408
  %v345 = vsel %vm343, %v308, 0
  %v348 = vsel %vm343, %v309, 0
  %v351 = vsel %vm343, %v310, 0
  %v354 = vsel %vm343, %v311, 0
  %v357 = vsel %vm343, %v312, 0
  %v360 = vsel %vm343, %v313, 0
  %v363 = vsel %vm343, %v314, 0
  %v366 = vsel %vm343, %v315, 0
  %v369 = vsel %vm343, %v316, 0
  %v372 = vsel %vm343, %v317, 0
  %v375 = vsel %vm343, %v318, 0
  %v378 = vsel %vm343, %v319, 0
  %v381 = vsel %vm343, %v320, 0
  %v384 = vsel %vm343, %v321, 0
  %v387 = vsel %vm343, %v322, 0
  %v390 = vsel %vm343, %v323, 0
  %392 = vmatprep.subr.mxu0 0.0
  %393 = vmatpush1.msra.mxu0 %v324
  %394 = vmatprep.subr.mxu0 0.0
  %395 = vmatpush1.msra.mxu0 %v325
  %396 = vmatprep.subr.mxu0 0.0
  %397 = vmatpush1.msra.mxu0 %v326
  %398 = vmatprep.subr.mxu0 0.0
  %399 = vmatpush1.msra.mxu0 %v327
  %400 = vmatprep.subr.mxu0 0.0
  %401 = vmatpush1.msra.mxu0 %v328
  %402 = vmatprep.subr.mxu0 0.0
  %403 = vmatpush1.msra.mxu0 %v329
  %404 = vmatprep.subr.mxu0 0.0
  %405 = vmatpush1.msra.mxu0 %v330
  %406 = vmatprep.subr.mxu0 0.0
  %407 = vmatpush1.msra.mxu0 %v331
  %408 = vmatprep.subr.mxu0 0.0
  %409 = vmatpush1.msra.mxu0 %v332
  %410 = vmatprep.subr.mxu0 0.0
  %411 = vmatpush1.msra.mxu0 %v333
  %412 = vmatprep.subr.mxu0 0.0
  %413 = vmatpush1.msra.mxu0 %v334
  %414 = vmatprep.subr.mxu0 0.0
  %415 = vmatpush1.msra.mxu0 %v335
  %416 = vmatprep.subr.mxu0 0.0
  %417 = vmatpush1.msra.mxu0 0.0
  %418 = vmatprep.subr.mxu0 0.0
  %419 = vmatpush1.msra.mxu0 0.0
  %420 = vmatprep.subr.mxu0 0.0
  %421 = vmatpush1.msra.mxu0 0.0
  %422 = vmatprep.subr.mxu0 0.0
  %423 = vmatpush1.msra.mxu0 0.0
  %424 = vmatprep.subr.mxu0 0.0
  %425 = vmatpush1.msra.mxu0 0.0
  %426 = vmatprep.subr.mxu0 0.0
  %427 = vmatpush1.msra.mxu0 0.0
  %428 = vmatprep.subr.mxu0 0.0
  %429 = vmatpush1.msra.mxu0 0.0
  %430 = vmatprep.subr.mxu0 0.0
  %431 = vmatpush1.msra.mxu0 0.0
  %432 = vmatprep.subr.mxu0 0.0
  %433 = vmatpush1.msra.mxu0 0.0
  %434 = vmatprep.subr.mxu0 0.0
  %435 = vmatpush1.msra.mxu0 0.0
  %436 = vmatprep.subr.mxu0 0.0
  %437 = vmatpush1.msra.mxu0 0.0
  %438 = vmatprep.subr.mxu0 0.0
  %439 = vmatpush1.msra.mxu0 0.0
  %440 = vmatprep.subr.mxu0 0.0
  %441 = vmatpush1.msra.mxu0 0.0
  %442 = vmatprep.subr.mxu0 0.0
  %443 = vmatpush1.msra.mxu0 0.0
  %444 = vmatprep.subr.mxu0 0.0
  %445 = vmatpush1.msra.mxu0 0.0
  %446 = vmatprep.subr.mxu0 0.0
  %447 = vmatpush1.msra.mxu0 0.0
  %448 = vmatprep.subr.mxu0 0.0
  %449 = vmatpush1.msra.mxu0 0.0
  %450 = vmatprep.subr.mxu0 0.0
  %451 = vmatpush1.msra.mxu0 0.0
  %452 = vmatprep.subr.mxu0 0.0
  %453 = vmatpush1.msra.mxu0 0.0
  %454 = vmatprep.subr.mxu0 0.0
  %455 = vmatpush1.msra.mxu0 0.0
  %456 = vmatprep.mubr.f32.mxu0 0.0
  %457 = vmatmul.mubr.f32.gmra.mrb[0].mxu0 %v345
  %v458 = vpop.f32.mrb[0].mxu0
  %v459 = vadd.f32 %v341, %v458
  %v460 = vpop.f32.mrb[0].mxu0
  %461 = vmatprep.mubr.f32.mxu0 0.0
  %462 = vmatmul.mubr.f32.gmra.mrb[0].mxu0 %v348
  %v463 = vpop.f32.mrb[0].mxu0
  %v464 = vadd.f32 %v341, %v463
  %v465 = vpop.f32.mrb[0].mxu0
  %466 = vmatprep.mubr.f32.mxu0 0.0
  %467 = vmatmul.mubr.f32.gmra.mrb[0].mxu0 %v351
  %v468 = vpop.f32.mrb[0].mxu0
  %v469 = vadd.f32 %v341, %v468
  %v470 = vpop.f32.mrb[0].mxu0
  %471 = vmatprep.mubr.f32.mxu0 0.0
  %472 = vmatmul.mubr.f32.gmra.mrb[0].mxu0 %v354
  %v473 = vpop.f32.mrb[0].mxu0
  %v474 = vadd.f32 %v341, %v473
  %v475 = vpop.f32.mrb[0].mxu0
  %476 = vmatprep.mubr.f32.mxu0 0.0
  %477 = vmatmul.mubr.f32.gmra.mrb[0].mxu0 %v357
  %v478 = vpop.f32.mrb[0].mxu0
  %v479 = vadd.f32 %v341, %v478
  %v480 = vpop.f32.mrb[0].mxu0
  %481 = vmatprep.mubr.f32.mxu0 0.0
  %482 = vmatmul.mubr.f32.gmra.mrb[0].mxu0 %v360
  %v483 = vpop.f32.mrb[0].mxu0
  %v484 = vadd.f32 %v341, %v483
  %v485 = vpop.f32.mrb[0].mxu0
  %486 = vmatprep.mubr.f32.mxu0 0.0
  %487 = vmatmul.mubr.f32.gmra.mrb[0].mxu0 %v363
  %v488 = vpop.f32.mrb[0].mxu0
  %v489 = vadd.f32 %v341, %v488
  %v490 = vpop.f32.mrb[0].mxu0
  %491 = vmatprep.mubr.f32.mxu0 0.0
  %492 = vmatmul.mubr.f32.gmra.mrb[0].mxu0 %v366
  %v493 = vpop.f32.mrb[0].mxu0
  %v494 = vadd.f32 %v341, %v493
  %v495 = vpop.f32.mrb[0].mxu0
  %496 = vmatprep.mubr.f32.mxu0 0.0
  %497 = vmatmul.mubr.f32.gmra.mrb[0].mxu0 %v369
  %v498 = vpop.f32.mrb[0].mxu0
  %v499 = vadd.f32 %v341, %v498
  %v500 = vpop.f32.mrb[0].mxu0
  %501 = vmatprep.mubr.f32.mxu0 0.0
  %502 = vmatmul.mubr.f32.gmra.mrb[0].mxu0 %v372
  %v503 = vpop.f32.mrb[0].mxu0
  %v504 = vadd.f32 %v341, %v503
  %v505 = vpop.f32.mrb[0].mxu0
  %506 = vmatprep.mubr.f32.mxu0 0.0
  %507 = vmatmul.mubr.f32.gmra.mrb[0].mxu0 %v375
  %v508 = vpop.f32.mrb[0].mxu0
  %v509 = vadd.f32 %v341, %v508
  %v510 = vpop.f32.mrb[0].mxu0
  %511 = vmatprep.mubr.f32.mxu0 0.0
  %512 = vmatmul.mubr.f32.gmra.mrb[0].mxu0 %v378
  %v513 = vpop.f32.mrb[0].mxu0
  %v514 = vadd.f32 %v341, %v513
  %v515 = vpop.f32.mrb[0].mxu0
  %516 = vmatprep.mubr.f32.mxu0 0.0
  %517 = vmatmul.mubr.f32.gmra.mrb[0].mxu0 %v381
  %v518 = vpop.f32.mrb[0].mxu0
  %v519 = vadd.f32 %v341, %v518
  %v520 = vpop.f32.mrb[0].mxu0
  %521 = vmatprep.mubr.f32.mxu0 0.0
  %522 = vmatmul.mubr.f32.gmra.mrb[0].mxu0 %v384
  %v523 = vpop.f32.mrb[0].mxu0
  %v524 = vadd.f32 %v341, %v523
  %v525 = vpop.f32.mrb[0].mxu0
  %526 = vmatprep.mubr.f32.mxu0 0.0
  %527 = vmatmul.mubr.f32.gmra.mrb[0].mxu0 %v387
  %v528 = vpop.f32.mrb[0].mxu0
  %v529 = vadd.f32 %v341, %v528
  %v530 = vpop.f32.mrb[0].mxu0
  %531 = vmatprep.mubr.f32.mxu0 0.0
  %532 = vmatmul.mubr.f32.gmra.mrb[0].mxu0 %v390
  %v533 = vpop.f32.mrb[0].mxu0
  %v534 = vadd.f32 %v341, %v533
  %v535 = vpop.f32.mrb[0].mxu0
  %536 = vdwg.mxu0
  %v537 = vmax.f32 %v459, 0.0
  %v538 = vmax.f32 %v464, 0.0
  %v539 = vmax.f32 %v469, 0.0
  %v540 = vmax.f32 %v474, 0.0
  %v541 = vmax.f32 %v479, 0.0
  %v542 = vmax.f32 %v484, 0.0
  %v543 = vmax.f32 %v489, 0.0
  %v544 = vmax.f32 %v494, 0.0
  %v545 = vmax.f32 %v499, 0.0
  %v546 = vmax.f32 %v504, 0.0
  %v547 = vmax.f32 %v509, 0.0
  %v548 = vmax.f32 %v514, 0.0
  %v549 = vmax.f32 %v519, 0.0
  %v550 = vmax.f32 %v524, 0.0
  %v551 = vmax.f32 %v529, 0.0
  %v552 = vmax.f32 %v534, 0.0
  %vm553 = vcmask 253952
  %554 = vst.msk [vmem:[#allocation2] sm:$0x1] %vm553, 0.0
  %555 = vst.msk [vmem:[#allocation2 + $0x10] sm:$0x1] %vm553, 0.0
  %556 = vst.msk [vmem:[#allocation2 + $0x20] sm:$0x1] %vm553, 0.0
  %557 = vst.msk [vmem:[#allocation2 + $0x30] sm:$0x1] %vm553, 0.0
  %558 = vst.msk [vmem:[#allocation2 + $0x40] sm:$0x1] %vm553, 0.0
  %559 = vst.msk [vmem:[#allocation2 + $0x50] sm:$0x1] %vm553, 0.0
  %560 = vst.msk [vmem:[#allocation2 + $0x60] sm:$0x1] %vm553, 0.0
  %561 = vst.msk [vmem:[#allocation2 + $0x70] sm:$0x1] %vm553, 0.0
  %562 = vst.msk [vmem:[#allocation2 + $0x80] sm:$0x1] %vm553, 0.0
  %563 = vst.msk [vmem:[#allocation2 + $0x90] sm:$0x1] %vm553, 0.0
  %564 = vst.msk [vmem:[#allocation2 + $0xa0] sm:$0x1] %vm553, 0.0
  %565 = vst.msk [vmem:[#allocation2 + $0xb0] sm:$0x1] %vm553, 0.0
  %566 = vst.msk [vmem:[#allocation2 + $0xc0] sm:$0x1] %vm553, 0.0
  %567 = vst.msk [vmem:[#allocation2 + $0xd0] sm:$0x1] %vm553, 0.0
  %568 = vst.msk [vmem:[#allocation2 + $0xe0] sm:$0x1] %vm553, 0.0
  %569 = vst.msk [vmem:[#allocation2 + $0xf0] sm:$0x1] %vm553, 0.0
  %570 = vst.msk [vmem:[#allocation2 + $0x9] sm:$0x1] %vm553, 0.0
  %571 = vst.msk [vmem:[#allocation2 + $0x19] sm:$0x1] %vm553, 0.0
  %572 = vst.msk [vmem:[#allocation2 + $0x29] sm:$0x1] %vm553, 0.0
  %573 = vst.msk [vmem:[#allocation2 + $0x39] sm:$0x1] %vm553, 0.0
  %574 = vst.msk [vmem:[#allocation2 + $0x49] sm:$0x1] %vm553, 0.0
  %575 = vst.msk [vmem:[#allocation2 + $0x59] sm:$0x1] %vm553, 0.0
  %576 = vst.msk [vmem:[#allocation2 + $0x69] sm:$0x1] %vm553, 0.0
  %577 = vst.msk [vmem:[#allocation2 + $0x79] sm:$0x1] %vm553, 0.0
  %578 = vst.msk [vmem:[#allocation2 + $0x89] sm:$0x1] %vm553, 0.0
  %579 = vst.msk [vmem:[#allocation2 + $0x99] sm:$0x1] %vm553, 0.0
  %580 = vst.msk [vmem:[#allocation2 + $0xa9] sm:$0x1] %vm553, 0.0
  %581 = vst.msk [vmem:[#allocation2 + $0xb9] sm:$0x1] %vm553, 0.0
  %582 = vst.msk [vmem:[#allocation2 + $0xc9] sm:$0x1] %vm553, 0.0
  %583 = vst.msk [vmem:[#allocation2 + $0xd9] sm:$0x1] %vm553, 0.0
  %584 = vst.msk [vmem:[#allocation2 + $0xe9] sm:$0x1] %vm553, 0.0
  %585 = vst.msk [vmem:[#allocation2 + $0xf9] sm:$0x1] %vm553, 0.0
  %586 = vst.msk [vmem:[#allocation2 + $0x1] sm:$0xff] %vm290, %v537
  %587 = vst.msk [vmem:[#allocation2 + $0x11] sm:$0xff] %vm290, %v538
  %588 = vst.msk [vmem:[#allocation2 + $0x21] sm:$0xff] %vm290, %v539
  %589 = vst.msk [vmem:[#allocation2 + $0x31] sm:$0xff] %vm290, %v540
  %590 = vst.msk [vmem:[#allocation2 + $0x41] sm:$0xff] %vm290, %v541
  %591 = vst.msk [vmem:[#allocation2 + $0x51] sm:$0xff] %vm290, %v542
  %592 = vst.msk [vmem:[#allocation2 + $0x61] sm:$0xff] %vm290, %v543
  %593 = vst.msk [vmem:[#allocation2 + $0x71] sm:$0xff] %vm290, %v544
  %594 = vst.msk [vmem:[#allocation2 + $0x81] sm:$0xff] %vm290, %v545
  %595 = vst.msk [vmem:[#allocation2 + $0x91] sm:$0xff] %vm290, %v546
  %596 = vst.msk [vmem:[#allocation2 + $0xa1] sm:$0xff] %vm290, %v547
  %597 = vst.msk [vmem:[#allocation2 + $0xb1] sm:$0xff] %vm290, %v548
  %598 = vst.msk [vmem:[#allocation2 + $0xc1] sm:$0xff] %vm290, %v549
  %599 = vst.msk [vmem:[#allocation2 + $0xd1] sm:$0xff] %vm290, %v550
  %600 = vst.msk [vmem:[#allocation2 + $0xe1] sm:$0xff] %vm290, %v551
  %601 = vst.msk [vmem:[#allocation2 + $0xf1] sm:$0xff] %vm290, %v552
  %v602 = vld [vmem:[#allocation2] sm:$0xff]
  %v603 = vld [vmem:[#allocation2 + $0x10] sm:$0xff]
  %v604 = vld [vmem:[#allocation2 + $0x20] sm:$0xff]
  %v605 = vld [vmem:[#allocation2 + $0x30] sm:$0xff]
  %v606 = vld [vmem:[#allocation2 + $0x40] sm:$0xff]
  %v607 = vld [vmem:[#allocation2 + $0x50] sm:$0xff]
  %v608 = vld [vmem:[#allocation2 + $0x60] sm:$0xff]
  %v609 = vld [vmem:[#allocation2 + $0x70] sm:$0xff]
  %v610 = vld [vmem:[#allocation2 + $0x80] sm:$0xff]
  %v611 = vld [vmem:[#allocation2 + $0x90] sm:$0xff]
  %v612 = vld [vmem:[#allocation2 + $0xa0] sm:$0xff]
  %v613 = vld [vmem:[#allocation2 + $0xb0] sm:$0xff]
  %v614 = vld [vmem:[#allocation2 + $0xc0] sm:$0xff]
  %v615 = vld [vmem:[#allocation2 + $0xd0] sm:$0xff]
  %v616 = vld [vmem:[#allocation2 + $0xe0] sm:$0xff]
  %v617 = vld [vmem:[#allocation2 + $0xf0] sm:$0xff]
  %v618 = vld [vmem:[#allocation2 + $0x1] sm:$0xff]
  %v619 = vld [vmem:[#allocation2 + $0x11] sm:$0xff]
  %v620 = vld [vmem:[#allocation2 + $0x21] sm:$0xff]
  %v621 = vld [vmem:[#allocation2 + $0x31] sm:$0xff]
  %v622 = vld [vmem:[#allocation2 + $0x41] sm:$0xff]
  %v623 = vld [vmem:[#allocation2 + $0x51] sm:$0xff]
  %v624 = vld [vmem:[#allocation2 + $0x61] sm:$0xff]
  %v625 = vld [vmem:[#allocation2 + $0x71] sm:$0xff]
  %v626 = vld [vmem:[#allocation2 + $0x81] sm:$0xff]
  %v627 = vld [vmem:[#allocation2 + $0x91] sm:$0xff]
  %v628 = vld [vmem:[#allocation2 + $0xa1] sm:$0xff]
  %v629 = vld [vmem:[#allocation2 + $0xb1] sm:$0xff]
  %v630 = vld [vmem:[#allocation2 + $0xc1] sm:$0xff]
  %v631 = vld [vmem:[#allocation2 + $0xd1] sm:$0xff]
  %v632 = vld [vmem:[#allocation2 + $0xe1] sm:$0xff]
  %v633 = vld [vmem:[#allocation2 + $0xf1] sm:$0xff]
  %v634 = vld [vmem:[#allocation2 + $0x2] sm:$0xff]
  %v635 = vld [vmem:[#allocation2 + $0x12] sm:$0xff]
  %v636 = vld [vmem:[#allocation2 + $0x22] sm:$0xff]
  %v637 = vld [vmem:[#allocation2 + $0x32] sm:$0xff]
  %v638 = vld [vmem:[#allocation2 + $0x42] sm:$0xff]
  %v639 = vld [vmem:[#allocation2 + $0x52] sm:$0xff]
  %v640 = vld [vmem:[#allocation2 + $0x62] sm:$0xff]
  %v641 = vld [vmem:[#allocation2 + $0x72] sm:$0xff]
  %v642 = vld [vmem:[#allocation2 + $0x82] sm:$0xff]
  %v643 = vld [vmem:[#allocation2 + $0x92] sm:$0xff]
  %v644 = vld [vmem:[#allocation2 + $0xa2] sm:$0xff]
  %v645 = vld [vmem:[#allocation2 + $0xb2] sm:$0xff]
  %v646 = vld [vmem:[#allocation2 + $0xc2] sm:$0xff]
  %v647 = vld [vmem:[#allocation2 + $0xd2] sm:$0xff]
  %v648 = vld [vmem:[#allocation2 + $0xe2] sm:$0xff]
  %v649 = vld [vmem:[#allocation2 + $0xf2] sm:$0xff]
  %666 = vrot.lane.b32.xlu0 %v618, 32
  %v667 = vpop.permute.xlu0 %666
  %668 = vrot.lane.b32.xlu0 %v619, 32
  %v669 = vpop.permute.xlu0 %668
  %670 = vrot.lane.b32.xlu0 %v620, 32
  %v671 = vpop.permute.xlu0 %670
  %672 = vrot.lane.b32.xlu0 %v621, 32
  %v673 = vpop.permute.xlu0 %672
  %674 = vrot.lane.b32.xlu0 %v622, 32
  %v675 = vpop.permute.xlu0 %674
  %676 = vrot.lane.b32.xlu0 %v623, 32
  %v677 = vpop.permute.xlu0 %676
  %678 = vrot.lane.b32.xlu0 %v624, 32
  %v679 = vpop.permute.xlu0 %678
  %680 = vrot.lane.b32.xlu0 %v625, 32
  %v681 = vpop.permute.xlu0 %680
  %682 = vrot.lane.b32.xlu0 %v626, 32
  %v683 = vpop.permute.xlu0 %682
  %684 = vrot.lane.b32.xlu0 %v627, 32
  %v685 = vpop.permute.xlu0 %684
  %686 = vrot.lane.b32.xlu0 %v628, 32
  %v687 = vpop.permute.xlu0 %686
  %688 = vrot.lane.b32.xlu0 %v629, 32
  %v689 = vpop.permute.xlu0 %688
  %690 = vrot.lane.b32.xlu0 %v630, 32
  %v691 = vpop.permute.xlu0 %690
  %692 = vrot.lane.b32.xlu0 %v631, 32
  %v693 = vpop.permute.xlu0 %692
  %694 = vrot.lane.b32.xlu0 %v632, 32
  %v695 = vpop.permute.xlu0 %694
  %696 = vrot.lane.b32.xlu0 %v633, 32
  %v697 = vpop.permute.xlu0 %696
  %730 = vrot.lane.b32.xlu0 %v634, 64
  %v731 = vpop.permute.xlu0 %730
  %732 = vrot.lane.b32.xlu0 %v635, 64
  %v733 = vpop.permute.xlu0 %732
  %734 = vrot.lane.b32.xlu0 %v636, 64
  %v735 = vpop.permute.xlu0 %734
  %736 = vrot.lane.b32.xlu0 %v637, 64
  %v737 = vpop.permute.xlu0 %736
  %738 = vrot.lane.b32.xlu0 %v638, 64
  %v739 = vpop.permute.xlu0 %738
  %740 = vrot.lane.b32.xlu0 %v639, 64
  %v741 = vpop.permute.xlu0 %740
  %742 = vrot.lane.b32.xlu0 %v640, 64
  %v743 = vpop.permute.xlu0 %742
  %744 = vrot.lane.b32.xlu0 %v641, 64
  %v745 = vpop.permute.xlu0 %744
  %746 = vrot.lane.b32.xlu0 %v642, 64
  %v747 = vpop.permute.xlu0 %746
  %748 = vrot.lane.b32.xlu0 %v643, 64
  %v749 = vpop.permute.xlu0 %748
  %750 = vrot.lane.b32.xlu0 %v644, 64
  %v751 = vpop.permute.xlu0 %750
  %752 = vrot.lane.b32.xlu0 %v645, 64
  %v753 = vpop.permute.xlu0 %752
  %754 = vrot.lane.b32.xlu0 %v646, 64
  %v755 = vpop.permute.xlu0 %754
  %756 = vrot.lane.b32.xlu0 %v647, 64
  %v757 = vpop.permute.xlu0 %756
  %758 = vrot.lane.b32.xlu0 %v648, 64
  %v759 = vpop.permute.xlu0 %758
  %760 = vrot.lane.b32.xlu0 %v649, 64
  %v761 = vpop.permute.xlu0 %760
  %v778 = vsel %vm290, %v602, %v667
  %v779 = vsel %vm290, %v603, %v669
  %v780 = vsel %vm290, %v604, %v671
  %v781 = vsel %vm290, %v605, %v673
  %v782 = vsel %vm290, %v606, %v675
  %v783 = vsel %vm290, %v607, %v677
  %v784 = vsel %vm290, %v608, %v679
  %v785 = vsel %vm290, %v609, %v681
  %v786 = vsel %vm290, %v610, %v683
  %v787 = vsel %vm290, %v611, %v685
  %v788 = vsel %vm290, %v612, %v687
  %v789 = vsel %vm290, %v613, %v689
  %v790 = vsel %vm290, %v614, %v691
  %v791 = vsel %vm290, %v615, %v693
  %v792 = vsel %vm290, %v616, %v695
  %v793 = vsel %vm290, %v617, %v697
  %v794 = vsel %vm307, %v778, %v731
  %v795 = vsel %vm307, %v779, %v733
  %v796 = vsel %vm307, %v780, %v735
  %v797 = vsel %vm307, %v781, %v737
  %v798 = vsel %vm307, %v782, %v739
  %v799 = vsel %vm307, %v783, %v741
  %v800 = vsel %vm307, %v784, %v743
  %v801 = vsel %vm307, %v785, %v745
  %v802 = vsel %vm307, %v786, %v747
  %v803 = vsel %vm307, %v787, %v749
  %v804 = vsel %vm307, %v788, %v751
  %v805 = vsel %vm307, %v789, %v753
  %v806 = vsel %vm307, %v790, %v755
  %v807 = vsel %vm307, %v791, %v757
  %v808 = vsel %vm307, %v792, %v759
  %v809 = vsel %vm307, %v793, %v761
  %v810 = vld [vmem:[%s3] sm:$0xff]
  %v811 = vld [vmem:[%s3 + $0x8] sm:$0xff]
  %v812 = vld [vmem:[%s3 + $0x10] sm:$0xff]
  %v813 = vld [vmem:[%s3 + $0x18] sm:$0xff]
  %v814 = vld [vmem:[%s3 + $0x20] sm:$0xff]
  %v815 = vld [vmem:[%s3 + $0x28] sm:$0xff]
  %v816 = vld [vmem:[%s3 + $0x30] sm:$0xff]
  %v817 = vld [vmem:[%s3 + $0x38] sm:$0xff]
  %v818 = vld [vmem:[%s3 + $0x40] sm:$0xff]
  %v819 = vld [vmem:[%s3 + $0x48] sm:$0xff]
  %v820 = vld [vmem:[%s3 + $0x50] sm:$0xff]
  %v821 = vld [vmem:[%s3 + $0x58] sm:$0xff]
  %v822 = vld [vmem:[%s4] sm:$0x1]
  %v824 = vlaneseq
  %v825 = vshrl.u32 %v824, 7
  %v826 = vsub.s32 0, %v825
  %v827 = vrot.slane %v822, %v826
  %v830 = vsel %vm343, %v794, 0
  %v833 = vsel %vm343, %v795, 0
  %v836 = vsel %vm343, %v796, 0
  %v839 = vsel %vm343, %v797, 0
  %v842 = vsel %vm343, %v798, 0
  %v845 = vsel %vm343, %v799, 0
  %v848 = vsel %vm343, %v800, 0
  %v851 = vsel %vm343, %v801, 0
  %v854 = vsel %vm343, %v802, 0
  %v857 = vsel %vm343, %v803, 0
  %v860 = vsel %vm343, %v804, 0
  %v863 = vsel %vm343, %v805, 0
  %v866 = vsel %vm343, %v806, 0
  %v869 = vsel %vm343, %v807, 0
  %v872 = vsel %vm343, %v808, 0
  %v875 = vsel %vm343, %v809, 0
  %877 = vmatprep.subr.mxu0 0.0
  %878 = vmatpush1.msra.mxu0 %v810
  %879 = vmatprep.subr.mxu0 0.0
  %880 = vmatpush1.msra.mxu0 %v811
  %881 = vmatprep.subr.mxu0 0.0
  %882 = vmatpush1.msra.mxu0 %v812
  %883 = vmatprep.subr.mxu0 0.0
  %884 = vmatpush1.msra.mxu0 %v813
  %885 = vmatprep.subr.mxu0 0.0
  %886 = vmatpush1.msra.mxu0 %v814
  %887 = vmatprep.subr.mxu0 0.0
  %888 = vmatpush1.msra.mxu0 %v815
  %889 = vmatprep.subr.mxu0 0.0
  %890 = vmatpush1.msra.mxu0 %v816
  %891 = vmatprep.subr.mxu0 0.0
  %892 = vmatpush1.msra.mxu0 %v817
  %893 = vmatprep.subr.mxu0 0.0
  %894 = vmatpush1.msra.mxu0 %v818
  %895 = vmatprep.subr.mxu0 0.0
  %896 = vmatpush1.msra.mxu0 %v819
  %897 = vmatprep.subr.mxu0 0.0
  %898 = vmatpush1.msra.mxu0 %v820
  %899 = vmatprep.subr.mxu0 0.0
  %900 = vmatpush1.msra.mxu0 %v821
  %901 = vmatprep.subr.mxu0 0.0
  %902 = vmatpush1.msra.mxu0 0.0
  %903 = vmatprep.subr.mxu0 0.0
  %904 = vmatpush1.msra.mxu0 0.0
  %905 = vmatprep.subr.mxu0 0.0
  %906 = vmatpush1.msra.mxu0 0.0
  %907 = vmatprep.subr.mxu0 0.0
  %908 = vmatpush1.msra.mxu0 0.0
  %909 = vmatprep.subr.mxu0 0.0
  %910 = vmatpush1.msra.mxu0 0.0
  %911 = vmatprep.subr.mxu0 0.0
  %912 = vmatpush1.msra.mxu0 0.0
  %913 = vmatprep.subr.mxu0 0.0
  %914 = vmatpush1.msra.mxu0 0.0
  %915 = vmatprep.subr.mxu0 0.0
  %916 = vmatpush1.msra.mxu0 0.0
  %917 = vmatprep.subr.mxu0 0.0
  %918 = vmatpush1.msra.mxu0 0.0
  %919 = vmatprep.subr.mxu0 0.0
  %920 = vmatpush1.msra.mxu0 0.0
  %921 = vmatprep.subr.mxu0 0.0
  %922 = vmatpush1.msra.mxu0 0.0
  %923 = vmatprep.subr.mxu0 0.0
  %924 = vmatpush1.msra.mxu0 0.0
  %925 = vmatprep.subr.mxu0 0.0
  %926 = vmatpush1.msra.mxu0 0.0
  %927 = vmatprep.subr.mxu0 0.0
  %928 = vmatpush1.msra.mxu0 0.0
  %929 = vmatprep.subr.mxu0 0.0
  %930 = vmatpush1.msra.mxu0 0.0
  %931 = vmatprep.subr.mxu0 0.0
  %932 = vmatpush1.msra.mxu0 0.0
  %933 = vmatprep.subr.mxu0 0.0
  %934 = vmatpush1.msra.mxu0 0.0
  %935 = vmatprep.subr.mxu0 0.0
  %936 = vmatpush1.msra.mxu0 0.0
  %937 = vmatprep.subr.mxu0 0.0
  %938 = vmatpush1.msra.mxu0 0.0
  %939 = vmatprep.subr.mxu0 0.0
  %940 = vmatpush1.msra.mxu0 0.0
  %941 = vmatprep.mubr.f32.mxu0 0.0
  %942 = vmatmul.mubr.f32.gmra.mrb[0].mxu0 %v830
  %v943 = vpop.f32.mrb[0].mxu0
  %v944 = vadd.f32 %v827, %v943
  %v945 = vpop.f32.mrb[0].mxu0
  %946 = vmatprep.mubr.f32.mxu0 0.0
  %947 = vmatmul.mubr.f32.gmra.mrb[0].mxu0 %v833
  %v948 = vpop.f32.mrb[0].mxu0
  %v949 = vadd.f32 %v827, %v948
  %v950 = vpop.f32.mrb[0].mxu0
  %951 = vmatprep.mubr.f32.mxu0 0.0
  %952 = vmatmul.mubr.f32.gmra.mrb[0].mxu0 %v836
  %v953 = vpop.f32.mrb[0].mxu0
  %v954 = vadd.f32 %v827, %v953
  %v955 = vpop.f32.mrb[0].mxu0
  %956 = vmatprep.mubr.f32.mxu0 0.0
  %957 = vmatmul.mubr.f32.gmra.mrb[0].mxu0 %v839
  %v958 = vpop.f32.mrb[0].mxu0
  %v959 = vadd.f32 %v827, %v958
  %v960 = vpop.f32.mrb[0].mxu0
  %961 = vmatprep.mubr.f32.mxu0 0.0
  %962 = vmatmul.mubr.f32.gmra.mrb[0].mxu0 %v842
  %v963 = vpop.f32.mrb[0].mxu0
  %v964 = vadd.f32 %v827, %v963
  %v965 = vpop.f32.mrb[0].mxu0
  %966 = vmatprep.mubr.f32.mxu0 0.0
  %967 = vmatmul.mubr.f32.gmra.mrb[0].mxu0 %v845
  %v968 = vpop.f32.mrb[0].mxu0
  %v969 = vadd.f32 %v827, %v968
  %v970 = vpop.f32.mrb[0].mxu0
  %971 = vmatprep.mubr.f32.mxu0 0.0
  %972 = vmatmul.mubr.f32.gmra.mrb[0].mxu0 %v848
  %v973 = vpop.f32.mrb[0].mxu0
  %v974 = vadd.f32 %v827, %v973
  %v975 = vpop.f32.mrb[0].mxu0
  %976 = vmatprep.mubr.f32.mxu0 0.0
  %977 = vmatmul.mubr.f32.gmra.mrb[0].mxu0 %v851
  %v978 = vpop.f32.mrb[0].mxu0
  %v979 = vadd.f32 %v827, %v978
  %v980 = vpop.f32.mrb[0].mxu0
  %981 = vmatprep.mubr.f32.mxu0 0.0
  %982 = vmatmul.mubr.f32.gmra.mrb[0].mxu0 %v854
  %v983 = vpop.f32.mrb[0].mxu0
  %v984 = vadd.f32 %v827, %v983
  %v985 = vpop.f32.mrb[0].mxu0
  %986 = vmatprep.mubr.f32.mxu0 0.0
  %987 = vmatmul.mubr.f32.gmra.mrb[0].mxu0 %v857
  %v988 = vpop.f32.mrb[0].mxu0
  %v989 = vadd.f32 %v827, %v988
  %v990 = vpop.f32.mrb[0].mxu0
  %991 = vmatprep.mubr.f32.mxu0 0.0
  %992 = vmatmul.mubr.f32.gmra.mrb[0].mxu0 %v860
  %v993 = vpop.f32.mrb[0].mxu0
  %v994 = vadd.f32 %v827, %v993
  %v995 = vpop.f32.mrb[0].mxu0
  %996 = vmatprep.mubr.f32.mxu0 0.0
  %997 = vmatmul.mubr.f32.gmra.mrb[0].mxu0 %v863
  %v998 = vpop.f32.mrb[0].mxu0
  %v999 = vadd.f32 %v827, %v998
  %v1000 = vpop.f32.mrb[0].mxu0
  %1001 = vmatprep.mubr.f32.mxu0 0.0
  %1002 = vmatmul.mubr.f32.gmra.mrb[0].mxu0 %v866
  %v1003 = vpop.f32.mrb[0].mxu0
  %v1004 = vadd.f32 %v827, %v1003
  %v1005 = vpop.f32.mrb[0].mxu0
  %1006 = vmatprep.mubr.f32.mxu0 0.0
  %1007 = vmatmul.mubr.f32.gmra.mrb[0].mxu0 %v869
  %v1008 = vpop.f32.mrb[0].mxu0
  %v1009 = vadd.f32 %v827, %v1008
  %v1010 = vpop.f32.mrb[0].mxu0
  %1011 = vmatprep.mubr.f32.mxu0 0.0
  %1012 = vmatmul.mubr.f32.gmra.mrb[0].mxu0 %v872
  %v1013 = vpop.f32.mrb[0].mxu0
  %v1014 = vadd.f32 %v827, %v1013
  %v1015 = vpop.f32.mrb[0].mxu0
  %1016 = vmatprep.mubr.f32.mxu0 0.0
  %1017 = vmatmul.mubr.f32.gmra.mrb[0].mxu0 %v875
  %v1018 = vpop.f32.mrb[0].mxu0
  %v1019 = vadd.f32 %v827, %v1018
  %v1020 = vpop.f32.mrb[0].mxu0
  %1021 = vdwg.mxu0
  %v1022 = vmax.f32 %v944, 0.0
  %v1023 = vmax.f32 %v949, 0.0
  %v1024 = vmax.f32 %v954, 0.0
  %v1025 = vmax.f32 %v959, 0.0
  %v1026 = vmax.f32 %v964, 0.0
  %v1027 = vmax.f32 %v969, 0.0
  %v1028 = vmax.f32 %v974, 0.0
  %v1029 = vmax.f32 %v979, 0.0
  %v1030 = vmax.f32 %v984, 0.0
  %v1031 = vmax.f32 %v989, 0.0
  %v1032 = vmax.f32 %v994, 0.0
  %v1033 = vmax.f32 %v999, 0.0
  %v1034 = vmax.f32 %v1004, 0.0
  %v1035 = vmax.f32 %v1009, 0.0
  %v1036 = vmax.f32 %v1014, 0.0
  %v1037 = vmax.f32 %v1019, 0.0
  %v1038 = vsel %vm290, %v1022, -inf
  %v1039 = vrot.slane %v1038, 4
  %v1040 = vmax.f32 %v1038, %v1039
  %v1041 = vrot.slane %v1040, 2
  %v1042 = vmax.f32 %v1040, %v1041
  %v1043 = vrot.slane %v1042, 1
  %v1044 = vmax.f32 %v1042, %v1043
  %v1045 = vsel %vm290, %v1023, -inf
  %v1046 = vrot.slane %v1045, 4
  %v1047 = vmax.f32 %v1045, %v1046
  %v1048 = vrot.slane %v1047, 2
  %v1049 = vmax.f32 %v1047, %v1048
  %v1050 = vrot.slane %v1049, 1
  %v1051 = vmax.f32 %v1049, %v1050
  %v1052 = vsel %vm290, %v1024, -inf
  %v1053 = vrot.slane %v1052, 4
  %v1054 = vmax.f32 %v1052, %v1053
  %v1055 = vrot.slane %v1054, 2
  %v1056 = vmax.f32 %v1054, %v1055
  %v1057 = vrot.slane %v1056, 1
  %v1058 = vmax.f32 %v1056, %v1057
  %v1059 = vsel %vm290, %v1025, -inf
  %v1060 = vrot.slane %v1059, 4
  %v1061 = vmax.f32 %v1059, %v1060
  %v1062 = vrot.slane %v1061, 2
  %v1063 = vmax.f32 %v1061, %v1062
  %v1064 = vrot.slane %v1063, 1
  %v1065 = vmax.f32 %v1063, %v1064
  %v1066 = vsel %vm290, %v1026, -inf
  %v1067 = vrot.slane %v1066, 4
  %v1068 = vmax.f32 %v1066, %v1067
  %v1069 = vrot.slane %v1068, 2
  %v1070 = vmax.f32 %v1068, %v1069
  %v1071 = vrot.slane %v1070, 1
  %v1072 = vmax.f32 %v1070, %v1071
  %v1073 = vsel %vm290, %v1027, -inf
  %v1074 = vrot.slane %v1073, 4
  %v1075 = vmax.f32 %v1073, %v1074
  %v1076 = vrot.slane %v1075, 2
  %v1077 = vmax.f32 %v1075, %v1076
  %v1078 = vrot.slane %v1077, 1
  %v1079 = vmax.f32 %v1077, %v1078
  %v1080 = vsel %vm290, %v1028, -inf
  %v1081 = vrot.slane %v1080, 4
  %v1082 = vmax.f32 %v1080, %v1081
  %v1083 = vrot.slane %v1082, 2
  %v1084 = vmax.f32 %v1082, %v1083
  %v1085 = vrot.slane %v1084, 1
  %v1086 = vmax.f32 %v1084, %v1085
  %v1087 = vsel %vm290, %v1029, -inf
  %v1088 = vrot.slane %v1087, 4
  %v1089 = vmax.f32 %v1087, %v1088
  %v1090 = vrot.slane %v1089, 2
  %v1091 = vmax.f32 %v1089, %v1090
  %v1092 = vrot.slane %v1091, 1
  %v1093 = vmax.f32 %v1091, %v1092
  %v1094 = vsel %vm290, %v1030, -inf
  %v1095 = vrot.slane %v1094, 4
  %v1096 = vmax.f32 %v1094, %v1095
  %v1097 = vrot.slane %v1096, 2
  %v1098 = vmax.f32 %v1096, %v1097
  %v1099 = vrot.slane %v1098, 1
  %v1100 = vmax.f32 %v1098, %v1099
  %v1101 = vsel %vm290, %v1031, -inf
  %v1102 = vrot.slane %v1101, 4
  %v1103 = vmax.f32 %v1101, %v1102
  %v1104 = vrot.slane %v1103, 2
  %v1105 = vmax.f32 %v1103, %v1104
  %v1106 = vrot.slane %v1105, 1
  %v1107 = vmax.f32 %v1105, %v1106
  %v1108 = vsel %vm290, %v1032, -inf
  %v1109 = vrot.slane %v1108, 4
  %v1110 = vmax.f32 %v1108, %v1109
  %v1111 = vrot.slane %v1110, 2
  %v1112 = vmax.f32 %v1110, %v1111
  %v1113 = vrot.slane %v1112, 1
  %v1114 = vmax.f32 %v1112, %v1113
  %v1115 = vsel %vm290, %v1033, -inf
  %v1116 = vrot.slane %v1115, 4
  %v1117 = vmax.f32 %v1115, %v1116
  %v1118 = vrot.slane %v1117, 2
  %v1119 = vmax.f32 %v1117, %v1118
  %v1120 = vrot.slane %v1119, 1
  %v1121 = vmax.f32 %v1119, %v1120
  %v1122 = vsel %vm290, %v1034, -inf
  %v1123 = vrot.slane %v1122, 4
  %v1124 = vmax.f32 %v1122, %v1123
  %v1125 = vrot.slane %v1124, 2
  %v1126 = vmax.f32 %v1124, %v1125
  %v1127 = vrot.slane %v1126, 1
  %v1128 = vmax.f32 %v1126, %v1127
  %v1129 = vsel %vm290, %v1035, -inf
  %v1130 = vrot.slane %v1129, 4
  %v1131 = vmax.f32 %v1129, %v1130
  %v1132 = vrot.slane %v1131, 2
  %v1133 = vmax.f32 %v1131, %v1132
  %v1134 = vrot.slane %v1133, 1
  %v1135 = vmax.f32 %v1133, %v1134
  %v1136 = vsel %vm290, %v1036, -inf
  %v1137 = vrot.slane %v1136, 4
  %v1138 = vmax.f32 %v1136, %v1137
  %v1139 = vrot.slane %v1138, 2
  %v1140 = vmax.f32 %v1138, %v1139
  %v1141 = vrot.slane %v1140, 1
  %v1142 = vmax.f32 %v1140, %v1141
  %v1143 = vsel %vm290, %v1037, -inf
  %v1144 = vrot.slane %v1143, 4
  %v1145 = vmax.f32 %v1143, %v1144
  %v1146 = vrot.slane %v1145, 2
  %v1147 = vmax.f32 %v1145, %v1146
  %v1148 = vrot.slane %v1147, 1
  %v1149 = vmax.f32 %v1147, %v1148
  %v1150 = vld [vmem:[%s5] sm:$0xff]
  %v1151 = vld [vmem:[%s5 + $0x8] sm:$0xff]
  %v1152 = vld [vmem:[%s5 + $0x10] sm:$0xff]
  %v1153 = vld [vmem:[%s5 + $0x18] sm:$0xff]
  %v1154 = vld [vmem:[%s5 + $0x20] sm:$0xff]
  %v1155 = vld [vmem:[%s5 + $0x28] sm:$0xff]
  %v1156 = vld [vmem:[%s5 + $0x30] sm:$0xff]
  %v1157 = vld [vmem:[%s5 + $0x38] sm:$0xff]
  %vm1166 = vcmask 1041409
  %v1167 = vsel %vm1166, %v1107, %v1100
  %vm1168 = vcmask 1042434
  %v1169 = vsel %vm1168, %v1114, %v1167
  %vm1170 = vcmask 1043459
  %v1171 = vsel %vm1170, %v1121, %v1169
  %vm1172 = vcmask 1044484
  %v1173 = vsel %vm1172, %v1128, %v1171
  %vm1174 = vcmask 1045509
  %v1175 = vsel %vm1174, %v1135, %v1173
  %vm1176 = vcmask 1046534
  %v1177 = vsel %vm1176, %v1142, %v1175
  %vm1178 = vcmask 1047559
  %v1179 = vsel %vm1178, %v1149, %v1177
  %v1180 = vsel %vm290, %v1179, 0
  %1182 = vmatprep.subr.mxu0 0.0
  %1183 = vmatpush1.msra.mxu0 %v1154
  %1184 = vmatprep.subr.mxu0 0.0
  %1185 = vmatpush1.msra.mxu0 %v1155
  %1186 = vmatprep.subr.mxu0 0.0
  %1187 = vmatpush1.msra.mxu0 %v1156
  %1188 = vmatprep.subr.mxu0 0.0
  %1189 = vmatpush1.msra.mxu0 %v1157
  %1190 = vmatprep.subr.mxu0 0.0
  %1191 = vmatpush1.msra.mxu0 0.0
  %1192 = vmatprep.subr.mxu0 0.0
  %1193 = vmatpush1.msra.mxu0 0.0
  %1194 = vmatprep.subr.mxu0 0.0
  %1195 = vmatpush1.msra.mxu0 0.0
  %1196 = vmatprep.subr.mxu0 0.0
  %1197 = vmatpush1.msra.mxu0 0.0
  %1198 = vmatprep.subr.mxu0 0.0
  %1199 = vmatpush1.msra.mxu0 0.0
  %1200 = vmatprep.subr.mxu0 0.0
  %1201 = vmatpush1.msra.mxu0 0.0
  %1202 = vmatprep.subr.mxu0 0.0
  %1203 = vmatpush1.msra.mxu0 0.0
  %1204 = vmatprep.subr.mxu0 0.0
  %1205 = vmatpush1.msra.mxu0 0.0
  %1206 = vmatprep.subr.mxu0 0.0
  %1207 = vmatpush1.msra.mxu0 0.0
  %1208 = vmatprep.subr.mxu0 0.0
  %1209 = vmatpush1.msra.mxu0 0.0
  %1210 = vmatprep.subr.mxu0 0.0
  %1211 = vmatpush1.msra.mxu0 0.0
  %1212 = vmatprep.subr.mxu0 0.0
  %1213 = vmatpush1.msra.mxu0 0.0
  %1214 = vmatprep.subr.mxu0 0.0
  %1215 = vmatpush1.msra.mxu0 0.0
  %1216 = vmatprep.subr.mxu0 0.0
  %1217 = vmatpush1.msra.mxu0 0.0
  %1218 = vmatprep.subr.mxu0 0.0
  %1219 = vmatpush1.msra.mxu0 0.0
  %1220 = vmatprep.subr.mxu0 0.0
  %1221 = vmatpush1.msra.mxu0 0.0
  %1222 = vmatprep.subr.mxu0 0.0
  %1223 = vmatpush1.msra.mxu0 0.0
  %1224 = vmatprep.subr.mxu0 0.0
  %1225 = vmatpush1.msra.mxu0 0.0
  %1226 = vmatprep.subr.mxu0 0.0
  %1227 = vmatpush1.msra.mxu0 0.0
  %1228 = vmatprep.subr.mxu0 0.0
  %1229 = vmatpush1.msra.mxu0 0.0
  %1230 = vmatprep.subr.mxu0 0.0
  %1231 = vmatpush1.msra.mxu0 0.0
  %1232 = vmatprep.subr.mxu0 0.0
  %1233 = vmatpush1.msra.mxu0 0.0
  %1234 = vmatprep.subr.mxu0 0.0
  %1235 = vmatpush1.msra.mxu0 0.0
  %1236 = vmatprep.subr.mxu0 0.0
  %1237 = vmatpush1.msra.mxu0 0.0
  %1238 = vmatprep.subr.mxu0 0.0
  %1239 = vmatpush1.msra.mxu0 0.0
  %1240 = vmatprep.subr.mxu0 0.0
  %1241 = vmatpush1.msra.mxu0 0.0
  %1242 = vmatprep.subr.mxu0 0.0
  %1243 = vmatpush1.msra.mxu0 0.0
  %1244 = vmatprep.subr.mxu0 0.0
  %1245 = vmatpush1.msra.mxu0 0.0
  %1246 = vmatprep.mubr.f32.mxu0 0.0
  %1247 = vmatmul.mubr.f32.gmra.mrb[0].mxu0 %v1180
  %v1248 = vpop.f32.mrb[0].mxu0
  %v1249 = vadd.f32 0.0, %v1248
  %v1250 = vpop.f32.mrb[0].mxu0
  %1251 = vdwg.mxu0
  %v1260 = vsel %vm1166, %v1051, %v1044
  %v1261 = vsel %vm1168, %v1058, %v1260
  %v1262 = vsel %vm1170, %v1065, %v1261
  %v1263 = vsel %vm1172, %v1072, %v1262
  %v1264 = vsel %vm1174, %v1079, %v1263
  %v1265 = vsel %vm1176, %v1086, %v1264
  %v1266 = vsel %vm1178, %v1093, %v1265
  %v1267 = vsel %vm290, %v1266, 0
  %1269 = vmatprep.subr.mxu0 0.0
  %1270 = vmatpush1.msra.mxu0 %v1150
  %1271 = vmatprep.subr.mxu0 0.0
  %1272 = vmatpush1.msra.mxu0 %v1151
  %1273 = vmatprep.subr.mxu0 0.0
  %1274 = vmatpush1.msra.mxu0 %v1152
  %1275 = vmatprep.subr.mxu0 0.0
  %1276 = vmatpush1.msra.mxu0 %v1153
  %1277 = vmatprep.subr.mxu0 0.0
  %1278 = vmatpush1.msra.mxu0 0.0
  %1279 = vmatprep.subr.mxu0 0.0
  %1280 = vmatpush1.msra.mxu0 0.0
  %1281 = vmatprep.subr.mxu0 0.0
  %1282 = vmatpush1.msra.mxu0 0.0
  %1283 = vmatprep.subr.mxu0 0.0
  %1284 = vmatpush1.msra.mxu0 0.0
  %1285 = vmatprep.subr.mxu0 0.0
  %1286 = vmatpush1.msra.mxu0 0.0
  %1287 = vmatprep.subr.mxu0 0.0
  %1288 = vmatpush1.msra.mxu0 0.0
  %1289 = vmatprep.subr.mxu0 0.0
  %1290 = vmatpush1.msra.mxu0 0.0
  %1291 = vmatprep.subr.mxu0 0.0
  %1292 = vmatpush1.msra.mxu0 0.0
  %1293 = vmatprep.subr.mxu0 0.0
  %1294 = vmatpush1.msra.mxu0 0.0
  %1295 = vmatprep.subr.mxu0 0.0
  %1296 = vmatpush1.msra.mxu0 0.0
  %1297 = vmatprep.subr.mxu0 0.0
  %1298 = vmatpush1.msra.mxu0 0.0
  %1299 = vmatprep.subr.mxu0 0.0
  %1300 = vmatpush1.msra.mxu0 0.0
  %1301 = vmatprep.subr.mxu0 0.0
  %1302 = vmatpush1.msra.mxu0 0.0
  %1303 = vmatprep.subr.mxu0 0.0
  %1304 = vmatpush1.msra.mxu0 0.0
  %1305 = vmatprep.subr.mxu0 0.0
  %1306 = vmatpush1.msra.mxu0 0.0
  %1307 = vmatprep.subr.mxu0 0.0
  %1308 = vmatpush1.msra.mxu0 0.0
  %1309 = vmatprep.subr.mxu0 0.0
  %1310 = vmatpush1.msra.mxu0 0.0
  %1311 = vmatprep.subr.mxu0 0.0
  %1312 = vmatpush1.msra.mxu0 0.0
  %1313 = vmatprep.subr.mxu0 0.0
  %1314 = vmatpush1.msra.mxu0 0.0
  %1315 = vmatprep.subr.mxu0 0.0
  %1316 = vmatpush1.msra.mxu0 0.0
  %1317 = vmatprep.subr.mxu0 0.0
  %1318 = vmatpush1.msra.mxu0 0.0
  %1319 = vmatprep.subr.mxu0 0.0
  %1320 = vmatpush1.msra.mxu0 0.0
  %1321 = vmatprep.subr.mxu0 0.0
  %1322 = vmatpush1.msra.mxu0 0.0
  %1323 = vmatprep.subr.mxu0 0.0
  %1324 = vmatpush1.msra.mxu0 0.0
  %1325 = vmatprep.subr.mxu0 0.0
  %1326 = vmatpush1.msra.mxu0 0.0
  %1327 = vmatprep.subr.mxu0 0.0
  %1328 = vmatpush1.msra.mxu0 0.0
  %1329 = vmatprep.subr.mxu0 0.0
  %1330 = vmatpush1.msra.mxu0 0.0
  %1331 = vmatprep.subr.mxu0 0.0
  %1332 = vmatpush1.msra.mxu0 0.0
  %1333 = vmatprep.mubr.f32.mxu0 0.0
  %1334 = vmatmul.mubr.f32.gmra.mrb[0].mxu0 %v1267
  %v1335 = vpop.f32.mrb[0].mxu0
  %v1336 = vadd.f32 %v1249, %v1335
  %v1337 = vpop.f32.mrb[0].mxu0
  %1338 = vdwg.mxu0
  %v1339 = vld [vmem:[%s6] sm:$0x1]
  %v1341 = vlaneseq
  %v1342 = vshrl.u32 %v1341, 7
  %v1343 = vsub.s32 0, %v1342
  %v1344 = vrot.slane %v1339, %v1343
  %v1346 = vadd.f32 %v1336, %v1344
  %v1347 = vmax.f32 %v1346, 0.0
  %v1348 = vld [vmem:[%s7] sm:$0xff]
  %v1349 = vld [vmem:[%s7 + $0x8] sm:$0xff]
  %v1350 = vld [vmem:[%s7 + $0x10] sm:$0xff]
  %v1351 = vld [vmem:[%s7 + $0x18] sm:$0xff]
  %v1352 = vld [vmem:[%s8] sm:$0x1]
  %v1354 = vlaneseq
  %v1355 = vshrl.u32 %v1354, 7
  %v1356 = vsub.s32 0, %v1355
  %v1357 = vrot.slane %v1352, %v1356
  %v1360 = vsel %vm290, %v1347, 0
  %1362 = vmatprep.subr.mxu0 0.0
  %1363 = vmatpush1.msra.mxu0 %v1348
  %1364 = vmatprep.subr.mxu0 0.0
  %1365 = vmatpush1.msra.mxu0 %v1349
  %1366 = vmatprep.subr.mxu0 0.0
  %1367 = vmatpush1.msra.mxu0 %v1350
  %1368 = vmatprep.subr.mxu0 0.0
  %1369 = vmatpush1.msra.mxu0 %v1351
  %1370 = vmatprep.subr.mxu0 0.0
  %1371 = vmatpush1.msra.mxu0 0.0
  %1372 = vmatprep.subr.mxu0 0.0
  %1373 = vmatpush1.msra.mxu0 0.0
  %1374 = vmatprep.subr.mxu0 0.0
  %1375 = vmatpush1.msra.mxu0 0.0
  %1376 = vmatprep.subr.mxu0 0.0
  %1377 = vmatpush1.msra.mxu0 0.0
  %1378 = vmatprep.subr.mxu0 0.0
  %1379 = vmatpush1.msra.mxu0 0.0
  %1380 = vmatprep.subr.mxu0 0.0
  %1381 = vmatpush1.msra.mxu0 0.0
  %1382 = vmatprep.subr.mxu0 0.0
  %1383 = vmatpush1.msra.mxu0 0.0
  %1384 = vmatprep.subr.mxu0 0.0
  %1385 = vmatpush1.msra.mxu0 0.0
  %1386 = vmatprep.subr.mxu0 0.0
  %1387 = vmatpush1.msra.mxu0 0.0
  %1388 = vmatprep.subr.mxu0 0.0
  %1389 = vmatpush1.msra.mxu0 0.0
  %1390 = vmatprep.subr.mxu0 0.0
  %1391 = vmatpush1.msra.mxu0 0.0
  %1392 = vmatprep.subr.mxu0 0.0
  %1393 = vmatpush1.msra.mxu0 0.0
  %1394 = vmatprep.subr.mxu0 0.0
  %1395 = vmatpush1.msra.mxu0 0.0
  %1396 = vmatprep.subr.mxu0 0.0
  %1397 = vmatpush1.msra.mxu0 0.0
  %1398 = vmatprep.subr.mxu0 0.0
  %1399 = vmatpush1.msra.mxu0 0.0
  %1400 = vmatprep.subr.mxu0 0.0
  %1401 = vmatpush1.msra.mxu0 0.0
  %1402 = vmatprep.subr.mxu0 0.0
  %1403 = vmatpush1.msra.mxu0 0.0
  %1404 = vmatprep.subr.mxu0 0.0
  %1405 = vmatpush1.msra.mxu0 0.0
  %1406 = vmatprep.subr.mxu0 0.0
  %1407 = vmatpush1.msra.mxu0 0.0
  %1408 = vmatprep.subr.mxu0 0.0
  %1409 = vmatpush1.msra.mxu0 0.0
  %1410 = vmatprep.subr.mxu0 0.0
  %1411 = vmatpush1.msra.mxu0 0.0
  %1412 = vmatprep.subr.mxu0 0.0
  %1413 = vmatpush1.msra.mxu0 0.0
  %1414 = vmatprep.subr.mxu0 0.0
  %1415 = vmatpush1.msra.mxu0 0.0
  %1416 = vmatprep.subr.mxu0 0.0
  %1417 = vmatpush1.msra.mxu0 0.0
  %1418 = vmatprep.subr.mxu0 0.0
  %1419 = vmatpush1.msra.mxu0 0.0
  %1420 = vmatprep.subr.mxu0 0.0
  %1421 = vmatpush1.msra.mxu0 0.0
  %1422 = vmatprep.subr.mxu0 0.0
  %1423 = vmatpush1.msra.mxu0 0.0
  %1424 = vmatprep.subr.mxu0 0.0
  %1425 = vmatpush1.msra.mxu0 0.0
  %1426 = vmatprep.mubr.f32.mxu0 0.0
  %1427 = vmatmul.mubr.f32.gmra.mrb[0].mxu0 %v1360
  %v1428 = vpop.f32.mrb[0].mxu0
  %v1429 = vadd.f32 %v1357, %v1428
  %v1430 = vpop.f32.mrb[0].mxu0
  %1431 = vdwg.mxu0
  %1432 = vst [vmem:[%s9] sm:$0xff] %v1429
  // Predicated region
  $region38: #{cnn_forward.1} parent=0 // pred_check
    _
  $region39: #{cnn_forward.1} parent=0 // pred_check_branch
    %1434 = sbr.rel (0) target = $region41
  $region40: #{cnn_forward.1} parent=0 // pred_region
    _
  $region41: #{cnn_forward.1} parent=0 // pred_fallthru
    _
  // Predicated region
  $region42: #{cnn_forward.1} parent=0 // pred_check
    _
  $region43: #{cnn_forward.1} parent=0 // pred_check_branch
    %1436 = sbr.rel (0) target = $region45
  $region44: #{cnn_forward.1} parent=0 // pred_region
    _
  $region45: #{cnn_forward.1} parent=0 // pred_fallthru
    _

</llo_original>
